<compile_context>
chip_gen: v7x
topology: tpu7x:2x2x1
jax: 0.10.0
libtpu: 0.0.40
codegen_flags: <defaults>
</compile_context>

<pallas_src>
import functools

import jax
import jax.numpy as jnp
from jax import lax
from jax.experimental import pallas as pl
from jax.experimental.pallas import tpu as pltpu

LN_EPS = 1e-5


# ---------------------------------------------------------------------------
# Fused kernel: one (batch, q-tile) grid step, everything stays in VMEM.
# ---------------------------------------------------------------------------
def _fused_double_attention_kernel(
    hid_ref, enc_ref, wq_ref, wkv_ref, wo_ref, bo_ref,
    gamma_ref, beta_ref, ext_ref, dist_ref, scale_ref,
    out_ref, sv_ref, *, heads, dim_head, mxu_dtype):
    """Channels-first layout.

    hid_ref   : (Dq, tq)        hidden tokens, q-tile
    enc_ref   : (C, Nk)         encoder tokens (resident per batch element)
    wq_ref    : (inner, Dq)     to_q^T           (pre-cast to mxu_dtype)
    wkv_ref   : (2*inner, C)    [to_k; to_v]^T   (pre-cast)
    wo_ref    : (Dq, inner)     to_out^T         (pre-cast)
    bo_ref    : (Dq, 1)         to_out bias
    gamma/beta: (C, 1)          LayerNorm affine
    ext/dist  : (heads, F, dh)  filters, head-batched (pre-cast)
    scale_ref : (1,) SMEM       learnable scale
    out_ref   : (Dq, tq)
    sv_ref    : (heads, dh, F)  scratch: v @ softmax(ext@k)^T, cached per batch
    """
    inner = heads * dim_head
    scale = scale_ref[0]

    # ---- K-side (independent of the q tile): compute once per batch --------
    @pl.when(pl.program_id(1) == 0)
    def _():
        x = enc_ref[...]                                          # (C, Nk) f32
        mu = jnp.mean(x, axis=0, keepdims=True)
        var = jnp.mean(jnp.square(x - mu), axis=0, keepdims=True)
        xn = (x - mu) * lax.rsqrt(var + LN_EPS)
        xn = xn * gamma_ref[...] + beta_ref[...]

        kv = jnp.dot(wkv_ref[...], xn.astype(mxu_dtype),
                     preferred_element_type=jnp.float32)          # (2*inner, Nk)
        k = kv[:inner, :].reshape(heads, dim_head, -1)            # (h, dh, Nk)
        v = kv[inner:, :].reshape(heads, dim_head, -1)            # (h, dh, Nk)

        # Spatial attention: softmax over keys (last axis).
        s = jnp.einsum("hfd,hdn->hfn", ext_ref[...], k.astype(mxu_dtype),
                       preferred_element_type=jnp.float32) * scale  # (h, F, Nk)
        s = jnp.exp(s - jnp.max(s, axis=-1, keepdims=True))
        s = s * pl.reciprocal(jnp.sum(s, axis=-1, keepdims=True), approx=True)

        # Cache sv = v @ s^T per head; the (Nq, Nk) matrix is never formed.
        sv_ref[...] = jnp.einsum("hdn,hfn->hdf", v.astype(mxu_dtype),
                                 s.astype(mxu_dtype),
                                 preferred_element_type=jnp.float32)  # (h, dh, F)

    # ---- Q-side: per q-tile -------------------------------------------------
    hid = hid_ref[...]                                            # (Dq, tq) f32
    q = jnp.dot(wq_ref[...], hid.astype(mxu_dtype),
                preferred_element_type=jnp.float32)               # (inner, tq)
    qh = q.reshape(heads, dim_head, -1)                           # (h, dh, tq)

    # Channel attention: softmax over the filter axis.
    c = jnp.einsum("hfd,hdq->hfq", dist_ref[...], qh.astype(mxu_dtype),
                   preferred_element_type=jnp.float32) * scale    # (h, F, tq)
    c = jnp.exp(c - jnp.max(c, axis=1, keepdims=True))
    c = c * pl.reciprocal(jnp.sum(c, axis=1, keepdims=True), approx=True)

    # o = sv @ c per head  (== c^T @ (s @ v) in token-major layout).
    o = jnp.einsum("hdf,hfq->hdq", sv_ref[...].astype(mxu_dtype),
                   c.astype(mxu_dtype),
                   preferred_element_type=jnp.float32)            # (h, dh, tq)

    # to_out folded as one matmul over the merged (heads*dh) axis.
    y = jnp.dot(wo_ref[...], o.reshape(inner, -1).astype(mxu_dtype),
                preferred_element_type=jnp.float32)               # (Dq, tq)

    out_ref[...] = (y + bo_ref[...] + hid * scale).astype(out_ref.dtype)


# ---------------------------------------------------------------------------
# Wrapper
# ---------------------------------------------------------------------------
def _pick_q_tile(nq, max_tile=512):
    if nq <= max_tile:
        return nq
    for t in (512, 384, 256, 128):
        if t <= max_tile and nq % t == 0:
            return t
    return nq


def _default_mxu_dtype():
    # bf16 MXU operands are the fast path on v6e/v7x; f32 elsewhere.
    try:
        kind = jax.devices()[0].device_kind.lower()
    except Exception:
        return jnp.float32
    return jnp.bfloat16 if ("v6" in kind or "v7" in kind or "7x" in kind) else jnp.float32


def double_attention(hidden_states, encoder_hidden_states, params, heads,
                     dim_head, *, mxu_dtype=None, max_q_tile=512):
    if mxu_dtype is None:
        mxu_dtype = _default_mxu_dtype()

    B, Dq, H, W = hidden_states.shape
    _, C, Hr, Wr = encoder_hidden_states.shape
    Nq, Nk = H * W, Hr * Wr
    inner = heads * dim_head
    F_ = params["extraction_filters"].shape[0]

    # Channels-first token layout: PURE reshapes of NCHW (no transposes).
    hid = hidden_states.reshape(B, Dq, Nq).astype(jnp.float32)
    enc = encoder_hidden_states.reshape(B, C, Nk).astype(jnp.float32)

    # Tiny weight prep (once per call, outside the kernel):
    wq_t = params["w_q"].T.astype(mxu_dtype)                               # (inner, Dq)
    wkv_t = jnp.concatenate([params["w_k"], params["w_v"]],
                            axis=1).T.astype(mxu_dtype)                    # (2*inner, C)
    wo_t = params["w_out"].T.astype(mxu_dtype)                             # (Dq, inner)
    ext = jnp.transpose(params["extraction_filters"].reshape(F_, heads, dim_head),
                        (1, 0, 2)).astype(mxu_dtype)                       # (heads, F, dh)
    dist = jnp.transpose(params["distribution_filters"].reshape(F_, heads, dim_head),
                         (1, 0, 2)).astype(mxu_dtype)
    gamma = params["ln_gamma"].reshape(C, 1).astype(jnp.float32)
    beta = params["ln_beta"].reshape(C, 1).astype(jnp.float32)
    b_out = params["b_out"].reshape(Dq, 1).astype(jnp.float32)
    scale = params["scale"].reshape(1).astype(jnp.float32)

    tq = _pick_q_tile(Nq, max_q_tile)
    n_qt = Nq // tq

    # Explicit scoped-VMEM limit (defaults are 16/32 MiB; v7x physical = 64 MiB).
    wbytes = jnp.dtype(mxu_dtype).itemsize
    est = (2 * 4 * (2 * Dq * tq + C * Nk)                                  # in/out blocks (x2 buf)
           + 2 * wbytes * (2 * inner * Dq + 2 * inner * C + 2 * F_ * inner)
           + 2 * 4 * (2 * inner * Nk + inner * tq
                      + heads * F_ * (Nk + tq) + heads * dim_head * F_ + Dq * tq))
    vmem_limit = int(min(64 << 20, max(2 * est, 32 << 20)))

    def rep(shape):  # weight blocks: same block every step -> stay resident
        zeros = (0,) * len(shape)
        return pl.BlockSpec(shape, lambda b, t: zeros)

    kernel = functools.partial(_fused_double_attention_kernel,
                               heads=heads, dim_head=dim_head, mxu_dtype=mxu_dtype)

    out_flat = pl.pallas_call(
        kernel,
        out_shape=jax.ShapeDtypeStruct((B, Dq, Nq), jnp.float32),
        grid=(B, n_qt),
        in_specs=[
            pl.BlockSpec((None, Dq, tq), lambda b, t: (b, 0, t)),   # hidden tokens (q tile)
            pl.BlockSpec((None, C, Nk), lambda b, t: (b, 0, 0)),    # encoder tokens (resident)
            rep((inner, Dq)),                                       # to_q^T
            rep((2 * inner, C)),                                    # [to_k; to_v]^T fused
            rep((Dq, inner)),                                       # to_out^T
            rep((Dq, 1)),                                           # to_out bias
            rep((C, 1)),                                            # ln gamma
            rep((C, 1)),                                            # ln beta
            rep((heads, F_, dim_head)),                             # extraction filters
            rep((heads, F_, dim_head)),                             # distribution filters
            pl.BlockSpec(memory_space=pltpu.MemorySpace.SMEM),      # learnable scale
        ],
        out_specs=pl.BlockSpec((None, Dq, tq), lambda b, t: (b, 0, t)),
        scratch_shapes=[pltpu.VMEM((heads, dim_head, F_), jnp.float32)],
        compiler_params=pltpu.CompilerParams(
            # q-tile axis is "arbitrary": the sv scratch is cached across it.
            dimension_semantics=("parallel", "arbitrary"),
            vmem_limit_bytes=vmem_limit),
    )(hid, enc, wq_t, wkv_t, wo_t, b_out, gamma, beta, ext, dist, scale)

    out = out_flat.reshape(B, Dq, H, W)          # pure reshape back to NCHW
    # TODO(synk): constraint-map MSE penalty is training-only (needs boolean
    # masking / clone semantics); with constraint_maps=None it is exactly 0.
    attn_penalty = jnp.float32(0.0)
    return out, attn_penalty


# ---------------------------------------------------------------------------
# Pure-JAX reference (mirrors the PyTorch forward) for the correctness check.
# ---------------------------------------------------------------------------
def double_attention_ref(hidden_states, encoder_hidden_states, params, heads,
                         dim_head):
    B, Dq, H, W = hidden_states.shape
    _, C, Hr, Wr = encoder_hidden_states.shape
    Nq, Nk = H * W, Hr * Wr
    inner = heads * dim_head
    F_ = params["extraction_filters"].shape[0]
    scale = params["scale"][0]

    hid = jnp.transpose(hidden_states, (0, 2, 3, 1)).reshape(B, Nq, Dq)
    enc = jnp.transpose(encoder_hidden_states, (0, 2, 3, 1)).reshape(B, Nk, C)
    mu = jnp.mean(enc, axis=-1, keepdims=True)
    var = jnp.mean(jnp.square(enc - mu), axis=-1, keepdims=True)
    enc = (enc - mu) / jnp.sqrt(var + LN_EPS) * params["ln_gamma"] + params["ln_beta"]

    q = hid @ params["w_q"]
    k = enc @ params["w_k"]
    v = enc @ params["w_v"]

    def h2b(x):  # (B, S, inner) -> (B, heads, S, dh)
        return jnp.transpose(x.reshape(B, -1, heads, dim_head), (0, 2, 1, 3))

    q, k, v = h2b(q), h2b(k), h2b(v)
    ext = jnp.transpose(
        params["extraction_filters"].reshape(F_, heads, dim_head), (1, 0, 2))
    dist = jnp.transpose(
        params["distribution_filters"].reshape(F_, heads, dim_head), (1, 0, 2))

    s = jax.nn.softmax(jnp.einsum("hfd,bhkd->bhfk", ext, k) * scale, axis=-1)
    c = jax.nn.softmax(jnp.einsum("hfd,bhqd->bhfq", dist, q) * scale, axis=2)
    attn = jnp.einsum("bhfq,bhfk->bhqk", c, s)
    o = jnp.einsum("bhqk,bhkd->bhqd", attn, v)
    o = jnp.transpose(o, (0, 2, 1, 3)).reshape(B, Nq, inner)
    o = o @ params["w_out"] + params["b_out"]
    o = jnp.transpose(o.reshape(B, H, W, Dq), (0, 3, 1, 2))
    return o + hidden_states * scale


# ---------------------------------------------------------------------------
# Main
# ---------------------------------------------------------------------------
if __name__ == "__main__":
    B = 2
    query_dim = 32
    cross_attention_dim = 32
    num_filters = 8
    heads = 2
    dim_head = 16
    inner = heads * dim_head
    H = W = 8
    Hr = Wr = 8

    key = jax.random.PRNGKey(0)
    ks = jax.random.split(key, 10)

    params = {
        "ln_gamma": jnp.ones((cross_attention_dim,), jnp.float32),
        "ln_beta": jnp.zeros((cross_attention_dim,), jnp.float32),
        "w_q": 0.02 * jax.random.normal(ks[0], (query_dim, inner), jnp.float32),
        "w_k": 0.02 * jax.random.normal(ks[1], (cross_attention_dim, inner), jnp.float32),
        "w_v": 0.02 * jax.random.normal(ks[2], (cross_attention_dim, inner), jnp.float32),
        "w_out": 0.02 * jax.random.normal(ks[3], (inner, query_dim), jnp.float32),
        "b_out": 0.01 * jax.random.normal(ks[4], (query_dim,), jnp.float32),
        "extraction_filters": jax.random.normal(ks[5], (num_filters, inner), jnp.float32),
        "distribution_filters": jax.random.normal(ks[6], (num_filters, inner), jnp.float32),
        "scale": jnp.ones((1,), jnp.float32),
    }

    x = jax.random.normal(ks[7], (B, query_dim, H, W), jnp.float32)
    enc = jax.random.normal(ks[8], (B, cross_attention_dim, Hr, Wr), jnp.float32)

    ref = double_attention_ref(x, enc, params, heads, dim_head)

    # f32 MXU operands (tight tolerance).
    out_f32, penalty = double_attention(x, enc, params, heads, dim_head,
                                        mxu_dtype=jnp.float32)
    out_f32 = jax.block_until_ready(out_f32)
    assert out_f32.shape == (B, query_dim, H, W)
    assert jnp.allclose(out_f32, ref, atol=2e-3, rtol=2e-3), "f32 mismatch vs reference"

    # bf16 MXU operands, f32 accumulation (v6e/v7x fast path).
    out_bf16, _ = double_attention(x, enc, params, heads, dim_head,
                                   mxu_dtype=jnp.bfloat16)
    out_bf16 = jax.block_until_ready(out_bf16)
    assert jnp.allclose(out_bf16, ref, atol=5e-2, rtol=5e-2), "bf16 mismatch vs reference"

    # Auto-selected MXU dtype (bf16 on v6e/v7x, f32 otherwise).
    out_auto, _ = double_attention(x, enc, params, heads, dim_head)
    out_auto = jax.block_until_ready(out_auto)
    assert jnp.allclose(out_auto, ref, atol=5e-2, rtol=5e-2), "auto mismatch vs reference"

    print("KERNEL_OK")
</pallas_src>

<mosaic_0001>
module attributes {stable_mosaic.version = 11 : i64} {
  func.func @_fused_double_attention_kernel(%arg0: i32, %arg1: i32, %arg2: memref<1x32x64xf32, #tpu.memory_space<vmem>>, %arg3: memref<1x32x64xf32, #tpu.memory_space<vmem>>, %arg4: memref<32x32xf32, #tpu.memory_space<vmem>>, %arg5: memref<64x32xf32, #tpu.memory_space<vmem>>, %arg6: memref<32x32xf32, #tpu.memory_space<vmem>>, %arg7: memref<32x1xf32, #tpu.memory_space<vmem>>, %arg8: memref<32x1xf32, #tpu.memory_space<vmem>>, %arg9: memref<32x1xf32, #tpu.memory_space<vmem>>, %arg10: memref<2x8x16xf32, #tpu.memory_space<vmem>>, %arg11: memref<2x8x16xf32, #tpu.memory_space<vmem>>, %arg12: memref<1xf32, #tpu.memory_space<smem>>, %arg13: memref<1x32x64xf32, #tpu.memory_space<vmem>>, %arg14: memref<2x16x8xf32, #tpu.memory_space<vmem>>) attributes {dimension_semantics = [#tpu.dimension_semantics<parallel>, #tpu.dimension_semantics<arbitrary>], iteration_bounds = array<i64: 2, 1>, scalar_prefetch = 0 : i64, scratch_operands = 1 : i64, tpu.core_type = #tpu.core_type<tc>, window_params = [{transform_indices = @transform_0, window_bounds = array<i64: 1, 32, 64>}, {transform_indices = @transform_1, window_bounds = array<i64: 1, 32, 64>}, {pipeline_mode = #tpu.pipeline_mode<synchronous>, transform_indices = @transform_2, window_bounds = array<i64: 32, 32>}, {pipeline_mode = #tpu.pipeline_mode<synchronous>, transform_indices = @transform_3, window_bounds = array<i64: 64, 32>}, {pipeline_mode = #tpu.pipeline_mode<synchronous>, transform_indices = @transform_4, window_bounds = array<i64: 32, 32>}, {pipeline_mode = #tpu.pipeline_mode<synchronous>, transform_indices = @transform_5, window_bounds = array<i64: 32, 1>}, {pipeline_mode = #tpu.pipeline_mode<synchronous>, transform_indices = @transform_6, window_bounds = array<i64: 32, 1>}, {pipeline_mode = #tpu.pipeline_mode<synchronous>, transform_indices = @transform_7, window_bounds = array<i64: 32, 1>}, {pipeline_mode = #tpu.pipeline_mode<synchronous>, transform_indices = @transform_8, window_bounds = array<i64: 2, 8, 16>}, {pipeline_mode = #tpu.pipeline_mode<synchronous>, transform_indices = @transform_9, window_bounds = array<i64: 2, 8, 16>}, {transform_indices = @transform_10, window_bounds = array<i64: 1>}, {transform_indices = @transform_11, window_bounds = array<i64: 1, 32, 64>}]} {
    %c0 = arith.constant 0 : index
    %0 = memref.load %arg12[%c0] : memref<1xf32, #tpu.memory_space<smem>>
    %c0_i32 = arith.constant 0 : i32
    %1 = arith.cmpi eq, %arg1, %c0_i32 : i32
    %2 = arith.extui %1 : i1 to i32
    %c0_i32_0 = arith.constant 0 : i32
    %3 = arith.cmpi ne, %2, %c0_i32_0 : i32
    scf.if %3 {
      %c0_24 = arith.constant 0 : index
      %c0_25 = arith.constant 0 : index
      %c0_26 = arith.constant 0 : index
      %37 = vector.load %arg3[%c0_24, %c0_25, %c0_26] : memref<1x32x64xf32, #tpu.memory_space<vmem>>, vector<1x32x64xf32>
      %38 = vector.shape_cast %37 : vector<1x32x64xf32> to vector<32x64xf32>
      %cst_27 = arith.constant dense<0.000000e+00> : vector<64xf32>
      %39 = vector.multi_reduction <add>, %38, %cst_27 [0] : vector<32x64xf32> to vector<64xf32>
      %40 = vector.shape_cast %39 : vector<64xf32> to vector<1x64xf32>
      %cst_28 = arith.constant 3.200000e+01 : f32
      %41 = vector.broadcast %cst_28 : f32 to vector<1x64xf32>
      %42 = arith.divf %40, %41 : vector<1x64xf32>
      %43 = vector.broadcast %42 : vector<1x64xf32> to vector<32x64xf32>
      %44 = arith.subf %38, %43 : vector<32x64xf32>
      %45 = arith.mulf %44, %44 : vector<32x64xf32>
      %cst_29 = arith.constant dense<0.000000e+00> : vector<64xf32>
      %46 = vector.multi_reduction <add>, %45, %cst_29 [0] : vector<32x64xf32> to vector<64xf32>
      %47 = vector.shape_cast %46 : vector<64xf32> to vector<1x64xf32>
      %cst_30 = arith.constant 3.200000e+01 : f32
      %48 = vector.broadcast %cst_30 : f32 to vector<1x64xf32>
      %49 = arith.divf %47, %48 : vector<1x64xf32>
      %50 = vector.broadcast %42 : vector<1x64xf32> to vector<32x64xf32>
      %51 = arith.subf %38, %50 : vector<32x64xf32>
      %cst_31 = arith.constant 9.99999974E-6 : f32
      %52 = vector.broadcast %cst_31 : f32 to vector<1x64xf32>
      %53 = arith.addf %49, %52 : vector<1x64xf32>
      %54 = math.rsqrt %53 : vector<1x64xf32>
      %55 = vector.broadcast %54 : vector<1x64xf32> to vector<32x64xf32>
      %56 = arith.mulf %51, %55 : vector<32x64xf32>
      %c0_32 = arith.constant 0 : index
      %c0_33 = arith.constant 0 : index
      %57 = vector.load %arg8[%c0_32, %c0_33] : memref<32x1xf32, #tpu.memory_space<vmem>>, vector<32x1xf32>
      %58 = vector.broadcast %57 : vector<32x1xf32> to vector<32x64xf32>
      %59 = arith.mulf %56, %58 : vector<32x64xf32>
      %c0_34 = arith.constant 0 : index
      %c0_35 = arith.constant 0 : index
      %60 = vector.load %arg9[%c0_34, %c0_35] : memref<32x1xf32, #tpu.memory_space<vmem>>, vector<32x1xf32>
      %61 = vector.broadcast %60 : vector<32x1xf32> to vector<32x64xf32>
      %62 = arith.addf %59, %61 : vector<32x64xf32>
      %c0_36 = arith.constant 0 : index
      %c0_37 = arith.constant 0 : index
      %63 = vector.load %arg5[%c0_36, %c0_37] : memref<64x32xf32, #tpu.memory_space<vmem>>, vector<64x32xf32>
      %cst_38 = arith.constant dense<0.000000e+00> : vector<64x64xf32>
      %64 = tpu.matmul %63, %62, %cst_38 {dimension_numbers = #tpu.dot_dimension_numbers<[1], [0], [0], [1], [0, 0, 1, 1], [], []>} : vector<64x32xf32>, vector<32x64xf32>, vector<64x64xf32> -> vector<64x64xf32>
      %65 = vector.extract_strided_slice %64 {offsets = [0, 0], sizes = [32, 64], strides = [1, 1]} : vector<64x64xf32> to vector<32x64xf32>
      %66 = vector.shape_cast %65 : vector<32x64xf32> to vector<2x16x64xf32>
      %67 = vector.extract_strided_slice %64 {offsets = [32, 0], sizes = [32, 64], strides = [1, 1]} : vector<64x64xf32> to vector<32x64xf32>
      %68 = vector.shape_cast %67 : vector<32x64xf32> to vector<2x16x64xf32>
      %c0_39 = arith.constant 0 : index
      %c0_40 = arith.constant 0 : index
      %c0_41 = arith.constant 0 : index
      %69 = vector.load %arg10[%c0_39, %c0_40, %c0_41] : memref<2x8x16xf32, #tpu.memory_space<vmem>>, vector<2x8x16xf32>
      "tpu.trace_start"() <{level = 10 : i32, message = "hfd,hdn->hfn"}> : () -> ()
      %cst_42 = arith.constant dense<0.000000e+00> : vector<2x8x64xf32>
      %70 = tpu.matmul %69, %66, %cst_42 {dimension_numbers = #tpu.dot_dimension_numbers<[2], [1], [1], [2], [0, 0, 0, 1, 1, 2], [0], [0]>} : vector<2x8x16xf32>, vector<2x16x64xf32>, vector<2x8x64xf32> -> vector<2x8x64xf32>
      "tpu.trace_stop"() : () -> ()
      %71 = vector.broadcast %0 : f32 to vector<2x8x64xf32>
      %72 = arith.mulf %70, %71 : vector<2x8x64xf32>
      %cst_43 = arith.constant dense<0xFF800000> : vector<2x8xf32>
      %73 = vector.multi_reduction <maximumf>, %72, %cst_43 [2] : vector<2x8x64xf32> to vector<2x8xf32>
      %74 = vector.shape_cast %73 : vector<2x8xf32> to vector<2x8x1xf32>
      %75 = vector.broadcast %74 : vector<2x8x1xf32> to vector<2x8x64xf32>
      %76 = arith.subf %72, %75 : vector<2x8x64xf32>
      %77 = math.exp %76 : vector<2x8x64xf32>
      %cst_44 = arith.constant dense<0.000000e+00> : vector<2x8xf32>
      %78 = vector.multi_reduction <add>, %77, %cst_44 [2] : vector<2x8x64xf32> to vector<2x8xf32>
      %79 = vector.shape_cast %78 : vector<2x8xf32> to vector<2x8x1xf32>
      %80 = tpu.reciprocal %79 {approx = true} : vector<2x8x1xf32> -> vector<2x8x1xf32>
      %81 = vector.broadcast %80 : vector<2x8x1xf32> to vector<2x8x64xf32>
      %82 = arith.mulf %77, %81 : vector<2x8x64xf32>
      "tpu.trace_start"() <{level = 10 : i32, message = "hdn,hfn->hdf"}> : () -> ()
      %cst_45 = arith.constant dense<0.000000e+00> : vector<2x16x8xf32>
      %83 = tpu.matmul %68, %82, %cst_45 {dimension_numbers = #tpu.dot_dimension_numbers<[2], [2], [1], [1], [0, 0, 0, 1, 1, 1], [0], [0]>} : vector<2x16x64xf32>, vector<2x8x64xf32>, vector<2x16x8xf32> -> vector<2x16x8xf32>
      "tpu.trace_stop"() : () -> ()
      %c0_46 = arith.constant 0 : index
      %c0_47 = arith.constant 0 : index
      %c0_48 = arith.constant 0 : index
      %84 = vector.load %arg14[%c0_46, %c0_47, %c0_48] : memref<2x16x8xf32, #tpu.memory_space<vmem>>, vector<2x16x8xf32>
      tpu.vector_store %arg14[%c0_46, %c0_47, %c0_48], %83 {strides = array<i32>} : memref<2x16x8xf32, #tpu.memory_space<vmem>>, vector<2x16x8xf32>,
    } else {
    }
    %c0_1 = arith.constant 0 : index
    %c0_2 = arith.constant 0 : index
    %c0_3 = arith.constant 0 : index
    %4 = vector.load %arg2[%c0_1, %c0_2, %c0_3] : memref<1x32x64xf32, #tpu.memory_space<vmem>>, vector<1x32x64xf32>
    %5 = vector.shape_cast %4 : vector<1x32x64xf32> to vector<32x64xf32>
    %c0_4 = arith.constant 0 : index
    %c0_5 = arith.constant 0 : index
    %6 = vector.load %arg4[%c0_4, %c0_5] : memref<32x32xf32, #tpu.memory_space<vmem>>, vector<32x32xf32>
    %cst = arith.constant dense<0.000000e+00> : vector<32x64xf32>
    %7 = tpu.matmul %6, %5, %cst {dimension_numbers = #tpu.dot_dimension_numbers<[1], [0], [0], [1], [0, 0, 1, 1], [], []>} : vector<32x32xf32>, vector<32x64xf32>, vector<32x64xf32> -> vector<32x64xf32>
    %8 = vector.shape_cast %7 : vector<32x64xf32> to vector<2x16x64xf32>
    %c0_6 = arith.constant 0 : index
    %c0_7 = arith.constant 0 : index
    %c0_8 = arith.constant 0 : index
    %9 = vector.load %arg11[%c0_6, %c0_7, %c0_8] : memref<2x8x16xf32, #tpu.memory_space<vmem>>, vector<2x8x16xf32>
    "tpu.trace_start"() <{level = 10 : i32, message = "hfd,hdq->hfq"}> : () -> ()
    %cst_9 = arith.constant dense<0.000000e+00> : vector<2x8x64xf32>
    %10 = tpu.matmul %9, %8, %cst_9 {dimension_numbers = #tpu.dot_dimension_numbers<[2], [1], [1], [2], [0, 0, 0, 1, 1, 2], [0], [0]>} : vector<2x8x16xf32>, vector<2x16x64xf32>, vector<2x8x64xf32> -> vector<2x8x64xf32>
    "tpu.trace_stop"() : () -> ()
    %11 = vector.broadcast %0 : f32 to vector<2x8x64xf32>
    %12 = arith.mulf %10, %11 : vector<2x8x64xf32>
    %cst_10 = arith.constant dense<0xFF800000> : vector<2x64xf32>
    %13 = vector.multi_reduction <maximumf>, %12, %cst_10 [1] : vector<2x8x64xf32> to vector<2x64xf32>
    %14 = vector.shape_cast %13 : vector<2x64xf32> to vector<2x1x64xf32>
    %15 = vector.broadcast %14 : vector<2x1x64xf32> to vector<2x8x64xf32>
    %16 = arith.subf %12, %15 : vector<2x8x64xf32>
    %17 = math.exp %16 : vector<2x8x64xf32>
    %cst_11 = arith.constant dense<0.000000e+00> : vector<2x64xf32>
    %18 = vector.multi_reduction <add>, %17, %cst_11 [1] : vector<2x8x64xf32> to vector<2x64xf32>
    %19 = vector.shape_cast %18 : vector<2x64xf32> to vector<2x1x64xf32>
    %20 = tpu.reciprocal %19 {approx = true} : vector<2x1x64xf32> -> vector<2x1x64xf32>
    %21 = vector.broadcast %20 : vector<2x1x64xf32> to vector<2x8x64xf32>
    %22 = arith.mulf %17, %21 : vector<2x8x64xf32>
    %c0_12 = arith.constant 0 : index
    %c0_13 = arith.constant 0 : index
    %c0_14 = arith.constant 0 : index
    %23 = vector.load %arg14[%c0_12, %c0_13, %c0_14] : memref<2x16x8xf32, #tpu.memory_space<vmem>>, vector<2x16x8xf32>
    "tpu.trace_start"() <{level = 10 : i32, message = "hdf,hfq->hdq"}> : () -> ()
    %cst_15 = arith.constant dense<0.000000e+00> : vector<2x16x64xf32>
    %24 = tpu.matmul %23, %22, %cst_15 {dimension_numbers = #tpu.dot_dimension_numbers<[2], [1], [1], [2], [0, 0, 0, 1, 1, 2], [0], [0]>} : vector<2x16x8xf32>, vector<2x8x64xf32>, vector<2x16x64xf32> -> vector<2x16x64xf32>
    "tpu.trace_stop"() : () -> ()
    %c0_16 = arith.constant 0 : index
    %c0_17 = arith.constant 0 : index
    %25 = vector.load %arg6[%c0_16, %c0_17] : memref<32x32xf32, #tpu.memory_space<vmem>>, vector<32x32xf32>
    %26 = vector.shape_cast %24 : vector<2x16x64xf32> to vector<32x64xf32>
    %cst_18 = arith.constant dense<0.000000e+00> : vector<32x64xf32>
    %27 = tpu.matmul %25, %26, %cst_18 {dimension_numbers = #tpu.dot_dimension_numbers<[1], [0], [0], [1], [0, 0, 1, 1], [], []>} : vector<32x32xf32>, vector<32x64xf32>, vector<32x64xf32> -> vector<32x64xf32>
    %c0_19 = arith.constant 0 : index
    %c0_20 = arith.constant 0 : index
    %28 = vector.load %arg7[%c0_19, %c0_20] : memref<32x1xf32, #tpu.memory_space<vmem>>, vector<32x1xf32>
    %29 = vector.broadcast %28 : vector<32x1xf32> to vector<32x64xf32>
    %30 = arith.addf %27, %29 : vector<32x64xf32>
    %31 = vector.broadcast %0 : f32 to vector<32x64xf32>
    %32 = arith.mulf %5, %31 : vector<32x64xf32>
    %33 = arith.addf %30, %32 : vector<32x64xf32>
    %c0_21 = arith.constant 0 : index
    %c0_22 = arith.constant 0 : index
    %c0_23 = arith.constant 0 : index
    %34 = vector.load %arg13[%c0_21, %c0_22, %c0_23] : memref<1x32x64xf32, #tpu.memory_space<vmem>>, vector<1x32x64xf32>
    %35 = vector.shape_cast %34 : vector<1x32x64xf32> to vector<32x64xf32>
    %36 = vector.shape_cast %33 : vector<32x64xf32> to vector<1x32x64xf32>
    tpu.vector_store %arg13[%c0_21, %c0_22, %c0_23], %36 {strides = array<i32>} : memref<1x32x64xf32, #tpu.memory_space<vmem>>, vector<1x32x64xf32>,
    return
  }
  func.func @transform_0(%arg0: i32, %arg1: i32) -> (i32, i32, i32) {
    %c0_i32 = arith.constant 0 : i32
    %c0_i32_0 = arith.constant 0 : i32
    return %arg0, %c0_i32, %arg1 : i32, i32, i32
  }
  func.func @transform_1(%arg0: i32, %arg1: i32) -> (i32, i32, i32) {
    %c0_i32 = arith.constant 0 : i32
    %c0_i32_0 = arith.constant 0 : i32
    %c0_i32_1 = arith.constant 0 : i32
    return %arg0, %c0_i32, %c0_i32_0 : i32, i32, i32
  }
  func.func @transform_2(%arg0: i32, %arg1: i32) -> (i32, i32) {
    %c0_i32 = arith.constant 0 : i32
    %c0_i32_0 = arith.constant 0 : i32
    %c0_i32_1 = arith.constant 0 : i32
    return %c0_i32, %c0_i32_0 : i32, i32
  }
  func.func @transform_3(%arg0: i32, %arg1: i32) -> (i32, i32) {
    %c0_i32 = arith.constant 0 : i32
    %c0_i32_0 = arith.constant 0 : i32
    %c0_i32_1 = arith.constant 0 : i32
    return %c0_i32, %c0_i32_0 : i32, i32
  }
  func.func @transform_4(%arg0: i32, %arg1: i32) -> (i32, i32) {
    %c0_i32 = arith.constant 0 : i32
    %c0_i32_0 = arith.constant 0 : i32
    %c0_i32_1 = arith.constant 0 : i32
    return %c0_i32, %c0_i32_0 : i32, i32
  }
  func.func @transform_5(%arg0: i32, %arg1: i32) -> (i32, i32) {
    %c0_i32 = arith.constant 0 : i32
    %c0_i32_0 = arith.constant 0 : i32
    %c0_i32_1 = arith.constant 0 : i32
    return %c0_i32, %c0_i32_0 : i32, i32
  }
  func.func @transform_6(%arg0: i32, %arg1: i32) -> (i32, i32) {
    %c0_i32 = arith.constant 0 : i32
    %c0_i32_0 = arith.constant 0 : i32
    %c0_i32_1 = arith.constant 0 : i32
    return %c0_i32, %c0_i32_0 : i32, i32
  }
  func.func @transform_7(%arg0: i32, %arg1: i32) -> (i32, i32) {
    %c0_i32 = arith.constant 0 : i32
    %c0_i32_0 = arith.constant 0 : i32
    %c0_i32_1 = arith.constant 0 : i32
    return %c0_i32, %c0_i32_0 : i32, i32
  }
  func.func @transform_8(%arg0: i32, %arg1: i32) -> (i32, i32, i32) {
    %c0_i32 = arith.constant 0 : i32
    %c0_i32_0 = arith.constant 0 : i32
    %c0_i32_1 = arith.constant 0 : i32
    %c0_i32_2 = arith.constant 0 : i32
    return %c0_i32, %c0_i32_0, %c0_i32_1 : i32, i32, i32
  }
  func.func @transform_9(%arg0: i32, %arg1: i32) -> (i32, i32, i32) {
    %c0_i32 = arith.constant 0 : i32
    %c0_i32_0 = arith.constant 0 : i32
    %c0_i32_1 = arith.constant 0 : i32
    %c0_i32_2 = arith.constant 0 : i32
    return %c0_i32, %c0_i32_0, %c0_i32_1 : i32, i32, i32
  }
  func.func @transform_10(%arg0: i32, %arg1: i32) -> i32 {
    %c0_i32 = arith.constant 0 : i32
    %c0_i32_0 = arith.constant 0 : i32
    return %c0_i32 : i32
  }
  func.func @transform_11(%arg0: i32, %arg1: i32) -> (i32, i32, i32) {
    %c0_i32 = arith.constant 0 : i32
    %c0_i32_0 = arith.constant 0 : i32
    return %arg0, %c0_i32, %arg1 : i32, i32, i32
  }
}

</mosaic_0001>

<llo_original>
// kernel: tpu_custom_call.1
$region0: #{tpu_custom_call.1}
  #allocation0 [shape = 'u32[]', space=smem, size = 0x4, offset = 0x4, fixed_abs, tag = 'smem constant byte address 0x4 - core index']
  #allocation1 [shape = 'u32[144,128]{1,0:T(1,128)}', space=vmem, size = 0x12000, scoped, tag = 'internal scratch']
  #allocation2 [shape = 'f32[2,16,8]{2,1,0:T(8,128)}', space=vmem, size = 0x4000, scoped, tag = 'scratch operand']
  #allocation3 [shape = 'f32[1]{0:T(128)S(6)}', space=smem, size = 0x200, scoped, tag = 'scoped memory for tpu_custom_call.1']
  %s0 = inlined_call_operand.vmem [shape: f32[2,32,64], index: 0, kind: input, shape index: {}]
  %s1 = inlined_call_operand.vmem [shape: f32[2,32,64], index: 1, kind: input, shape index: {}]
  %s2 = inlined_call_operand.vmem [shape: f32[32,32], index: 2, kind: input, shape index: {}]
  %s3 = inlined_call_operand.vmem [shape: f32[64,32], index: 3, kind: input, shape index: {}]
  %s4 = inlined_call_operand.vmem [shape: f32[32,32], index: 4, kind: input, shape index: {}]
  %s5 = inlined_call_operand.vmem [shape: f32[32,1], index: 5, kind: input, shape index: {}]
  %s6 = inlined_call_operand.vmem [shape: f32[32,1], index: 6, kind: input, shape index: {}]
  %s7 = inlined_call_operand.vmem [shape: f32[32,1], index: 7, kind: input, shape index: {}]
  %s8 = inlined_call_operand.vmem [shape: f32[2,8,16], index: 8, kind: input, shape index: {}]
  %s9 = inlined_call_operand.vmem [shape: f32[2,8,16], index: 9, kind: input, shape index: {}]
  %s10 = inlined_call_operand.<no memory space> [shape: f32[1], index: 10, kind: input, shape index: {}]
  %s11 = inlined_call_operand.hbm [shape: f32[2,32,64], index: 11, kind: output, shape index: {}]
  %s12 = sld [smem:[#allocation0]]
  $region81: #{tpu_custom_call.1} parent=0
    _
  %s14 = ssub.s32 1, %s12
  %s15 = scalar_select 0, %s14, %s12
  %16 = sst [smem:[#allocation3]] %s10
  $region1: #{tpu_custom_call.1} parent=0
    #allocation4 [shape = 'u8[32768]{0}', space=vmem, size = 0x8000, scoped, tag = 'output window, operand 0']
    #allocation5 [shape = 's32[2]{0}', space=sflag, size = 0x8, scoped, tag = 'scoped memory for tpu_custom_call.1']
    %17 = vsyncpa [#allocation5], 0
    %s18 = scalar_lea.sflag [#allocation5], 1
    %19 = vsyncpa %s18, 0
    loop: start=0, step=1, limit=4
    $region2: #{tpu_custom_call.1} parent=1 // loop_pre_header
      _
    $region3: #{tpu_custom_call.1} parent=1 // loop_header
      %s21 = sphi 0, %s25
      %p22 = scmp.ge.s32.totalorder %s21, 4
      %s28 = sphi 0, %s40
      %s29 = sphi 0, %s36
      %s30 = sphi 0, %s28
      %s31 = sphi 0, %s29
      %s32 = sphi 0, %s30
      %s33 = sphi 0, %s31
      %s45 = sphi 0, %s47
      %s48 = sphi 0, %s45
      %s49 = sphi 0, %s48
      %s65 = sphi 0, %s49
      %s71 = sphi 0, %s73
      %s74 = sphi 0, %s71
      %s75 = sphi 0, %s74
      %s91 = sphi 0, %s75
      %s95 = sphi 0, %s95
      %s97 = sphi 0, %s95
      %s98 = sphi 0, %s97
      %s112 = sphi 0, %s98
      %s116 = sphi 0, %s116
      %s118 = sphi 0, %s116
      %s119 = sphi 0, %s118
      %s133 = sphi 0, %s119
      %s137 = sphi 0, %s137
      %s139 = sphi 0, %s137
      %s140 = sphi 0, %s139
      %s154 = sphi 0, %s140
      %s158 = sphi 0, %s158
      %s160 = sphi 0, %s158
      %s161 = sphi 0, %s160
      %s175 = sphi 0, %s161
      %s179 = sphi 0, %s179
      %s181 = sphi 0, %s179
      %s182 = sphi 0, %s181
      %s196 = sphi 0, %s182
      %s200 = sphi 0, %s200
      %s202 = sphi 0, %s200
      %s203 = sphi 0, %s202
      %s217 = sphi 0, %s203
      %s221 = sphi 0, %s221
      %s223 = sphi 0, %s221
      %s224 = sphi 0, %s223
      %s238 = sphi 0, %s224
      %s242 = sphi 0, %s242
      %s244 = sphi 0, %s242
      %s245 = sphi 0, %s244
      %s259 = sphi 0, %s245
      %s263 = sphi 0, %s263
      %s265 = sphi 0, %s263
      %s266 = sphi 0, %s265
      %s280 = sphi 0, %s266
      %s288 = sphi 0, %s290
      %s291 = sphi 0, %s288
      %s292 = sphi 0, %s291
      %s308 = sphi 0, %s292
    $region4: #{tpu_custom_call.1} parent=1 // loop_header_branch
      %24 = sbr.rel (%p22) target = $region8
    $region5: #{tpu_custom_call.1} parent=1 // loop_body
      %s26 = ssub.s32 %s21, 1
      %s27 = ssub.s32 %s21, 2
      %s34 = sadd.s32 1, %s29
      %p35 = scmp.ge.s32.totalorder %s34, 1
      %s36 = scalar_select %p35, 0, %s34
      %s37 = sadd.s32 1, %s28
      %s38 = scalar_select %p35, %s37, %s28
      %p39 = scmp.ge.s32.totalorder %s38, 2
      %s40 = scalar_select %p39, 0, %s38
      %s41 = ssub.s32 %s28, %s40
      %s42 = ssub.s32 %s29, %s36
      %s43 = sor.u32 %s41, %s42
      %p44 = scmp.eq.s32.totalorder %s43, 0
      %s46 = sadd.s32 %s45, 1
      %s47 = scalar_select %p44, %s45, %s46
      %p50 = pneg %p44
      %p51 = scmp.eq.s32.totalorder %s21, 1
      %p52 = por %p50, %p51
      %p53 = scmp.ne.s32.totalorder %s45, %s48
      %p54 = scmp.eq.s32.totalorder %s21, 0
      %p55 = por %p53, %p54
      %p56 = scmp.ne.s32.totalorder %s45, %s48
      %p57 = scmp.eq.s32.totalorder %s26, 1
      %p58 = por %p56, %p57
      %p59 = scmp.ne.s32.totalorder %s48, %s49
      %p60 = scmp.eq.s32.totalorder %s26, 0
      %p61 = por %p59, %p60
      %p62 = scmp.ne.s32.totalorder %s48, %s49
      %p63 = scmp.eq.s32.totalorder %s27, 1
      %p64 = por %p62, %p63
      %p66 = scmp.ne.s32.totalorder %s49, %s65
      %p67 = scmp.eq.s32.totalorder %s27, 0
      %p68 = por %p66, %p67
      %s69 = ssub.s32 %s28, %s40
      %p70 = scmp.eq.s32.totalorder %s69, 0
      %s72 = sadd.s32 %s71, 1
      %s73 = scalar_select %p70, %s71, %s72
      %p76 = pneg %p70
      %p77 = scmp.eq.s32.totalorder %s21, 1
      %p78 = por %p76, %p77
      %p79 = scmp.ne.s32.totalorder %s71, %s74
      %p80 = scmp.eq.s32.totalorder %s21, 0
      %p81 = por %p79, %p80
      %p82 = scmp.ne.s32.totalorder %s71, %s74
      %p83 = scmp.eq.s32.totalorder %s26, 1
      %p84 = por %p82, %p83
      %p85 = scmp.ne.s32.totalorder %s74, %s75
      %p86 = scmp.eq.s32.totalorder %s26, 0
      %p87 = por %p85, %p86
      %p88 = scmp.ne.s32.totalorder %s74, %s75
      %p89 = scmp.eq.s32.totalorder %s27, 1
      %p90 = por %p88, %p89
      %p92 = scmp.ne.s32.totalorder %s75, %s91
      %p93 = scmp.eq.s32.totalorder %s27, 0
      %p94 = por %p92, %p93
      %s96 = sadd.s32 %s95, 1
      %p99 = scmp.eq.s32.totalorder %s21, 1
      %p100 = scmp.ne.s32.totalorder %s95, %s97
      %p101 = scmp.eq.s32.totalorder %s21, 0
      %p102 = por %p100, %p101
      %p103 = scmp.ne.s32.totalorder %s95, %s97
      %p104 = scmp.eq.s32.totalorder %s26, 1
      %p105 = por %p103, %p104
      %p106 = scmp.ne.s32.totalorder %s97, %s98
      %p107 = scmp.eq.s32.totalorder %s26, 0
      %p108 = por %p106, %p107
      %p109 = scmp.ne.s32.totalorder %s97, %s98
      %p110 = scmp.eq.s32.totalorder %s27, 1
      %p111 = por %p109, %p110
      %p113 = scmp.ne.s32.totalorder %s98, %s112
      %p114 = scmp.eq.s32.totalorder %s27, 0
      %p115 = por %p113, %p114
      %s117 = sadd.s32 %s116, 1
      %p120 = scmp.eq.s32.totalorder %s21, 1
      %p121 = scmp.ne.s32.totalorder %s116, %s118
      %p122 = scmp.eq.s32.totalorder %s21, 0
      %p123 = por %p121, %p122
      %p124 = scmp.ne.s32.totalorder %s116, %s118
      %p125 = scmp.eq.s32.totalorder %s26, 1
      %p126 = por %p124, %p125
      %p127 = scmp.ne.s32.totalorder %s118, %s119
      %p128 = scmp.eq.s32.totalorder %s26, 0
      %p129 = por %p127, %p128
      %p130 = scmp.ne.s32.totalorder %s118, %s119
      %p131 = scmp.eq.s32.totalorder %s27, 1
      %p132 = por %p130, %p131
      %p134 = scmp.ne.s32.totalorder %s119, %s133
      %p135 = scmp.eq.s32.totalorder %s27, 0
      %p136 = por %p134, %p135
      %s138 = sadd.s32 %s137, 1
      %p141 = scmp.eq.s32.totalorder %s21, 1
      %p142 = scmp.ne.s32.totalorder %s137, %s139
      %p143 = scmp.eq.s32.totalorder %s21, 0
      %p144 = por %p142, %p143
      %p145 = scmp.ne.s32.totalorder %s137, %s139
      %p146 = scmp.eq.s32.totalorder %s26, 1
      %p147 = por %p145, %p146
      %p148 = scmp.ne.s32.totalorder %s139, %s140
      %p149 = scmp.eq.s32.totalorder %s26, 0
      %p150 = por %p148, %p149
      %p151 = scmp.ne.s32.totalorder %s139, %s140
      %p152 = scmp.eq.s32.totalorder %s27, 1
      %p153 = por %p151, %p152
      %p155 = scmp.ne.s32.totalorder %s140, %s154
      %p156 = scmp.eq.s32.totalorder %s27, 0
      %p157 = por %p155, %p156
      %s159 = sadd.s32 %s158, 1
      %p162 = scmp.eq.s32.totalorder %s21, 1
      %p163 = scmp.ne.s32.totalorder %s158, %s160
      %p164 = scmp.eq.s32.totalorder %s21, 0
      %p165 = por %p163, %p164
      %p166 = scmp.ne.s32.totalorder %s158, %s160
      %p167 = scmp.eq.s32.totalorder %s26, 1
      %p168 = por %p166, %p167
      %p169 = scmp.ne.s32.totalorder %s160, %s161
      %p170 = scmp.eq.s32.totalorder %s26, 0
      %p171 = por %p169, %p170
      %p172 = scmp.ne.s32.totalorder %s160, %s161
      %p173 = scmp.eq.s32.totalorder %s27, 1
      %p174 = por %p172, %p173
      %p176 = scmp.ne.s32.totalorder %s161, %s175
      %p177 = scmp.eq.s32.totalorder %s27, 0
      %p178 = por %p176, %p177
      %s180 = sadd.s32 %s179, 1
      %p183 = scmp.eq.s32.totalorder %s21, 1
      %p184 = scmp.ne.s32.totalorder %s179, %s181
      %p185 = scmp.eq.s32.totalorder %s21, 0
      %p186 = por %p184, %p185
      %p187 = scmp.ne.s32.totalorder %s179, %s181
      %p188 = scmp.eq.s32.totalorder %s26, 1
      %p189 = por %p187, %p188
      %p190 = scmp.ne.s32.totalorder %s181, %s182
      %p191 = scmp.eq.s32.totalorder %s26, 0
      %p192 = por %p190, %p191
      %p193 = scmp.ne.s32.totalorder %s181, %s182
      %p194 = scmp.eq.s32.totalorder %s27, 1
      %p195 = por %p193, %p194
      %p197 = scmp.ne.s32.totalorder %s182, %s196
      %p198 = scmp.eq.s32.totalorder %s27, 0
      %p199 = por %p197, %p198
      %s201 = sadd.s32 %s200, 1
      %p204 = scmp.eq.s32.totalorder %s21, 1
      %p205 = scmp.ne.s32.totalorder %s200, %s202
      %p206 = scmp.eq.s32.totalorder %s21, 0
      %p207 = por %p205, %p206
      %p208 = scmp.ne.s32.totalorder %s200, %s202
      %p209 = scmp.eq.s32.totalorder %s26, 1
      %p210 = por %p208, %p209
      %p211 = scmp.ne.s32.totalorder %s202, %s203
      %p212 = scmp.eq.s32.totalorder %s26, 0
      %p213 = por %p211, %p212
      %p214 = scmp.ne.s32.totalorder %s202, %s203
      %p215 = scmp.eq.s32.totalorder %s27, 1
      %p216 = por %p214, %p215
      %p218 = scmp.ne.s32.totalorder %s203, %s217
      %p219 = scmp.eq.s32.totalorder %s27, 0
      %p220 = por %p218, %p219
      %s222 = sadd.s32 %s221, 1
      %p225 = scmp.eq.s32.totalorder %s21, 1
      %p226 = scmp.ne.s32.totalorder %s221, %s223
      %p227 = scmp.eq.s32.totalorder %s21, 0
      %p228 = por %p226, %p227
      %p229 = scmp.ne.s32.totalorder %s221, %s223
      %p230 = scmp.eq.s32.totalorder %s26, 1
      %p231 = por %p229, %p230
      %p232 = scmp.ne.s32.totalorder %s223, %s224
      %p233 = scmp.eq.s32.totalorder %s26, 0
      %p234 = por %p232, %p233
      %p235 = scmp.ne.s32.totalorder %s223, %s224
      %p236 = scmp.eq.s32.totalorder %s27, 1
      %p237 = por %p235, %p236
      %p239 = scmp.ne.s32.totalorder %s224, %s238
      %p240 = scmp.eq.s32.totalorder %s27, 0
      %p241 = por %p239, %p240
      %s243 = sadd.s32 %s242, 1
      %p246 = scmp.eq.s32.totalorder %s21, 1
      %p247 = scmp.ne.s32.totalorder %s242, %s244
      %p248 = scmp.eq.s32.totalorder %s21, 0
      %p249 = por %p247, %p248
      %p250 = scmp.ne.s32.totalorder %s242, %s244
      %p251 = scmp.eq.s32.totalorder %s26, 1
      %p252 = por %p250, %p251
      %p253 = scmp.ne.s32.totalorder %s244, %s245
      %p254 = scmp.eq.s32.totalorder %s26, 0
      %p255 = por %p253, %p254
      %p256 = scmp.ne.s32.totalorder %s244, %s245
      %p257 = scmp.eq.s32.totalorder %s27, 1
      %p258 = por %p256, %p257
      %p260 = scmp.ne.s32.totalorder %s245, %s259
      %p261 = scmp.eq.s32.totalorder %s27, 0
      %p262 = por %p260, %p261
      %s264 = sadd.s32 %s263, 1
      %p267 = scmp.eq.s32.totalorder %s21, 1
      %p268 = scmp.ne.s32.totalorder %s263, %s265
      %p269 = scmp.eq.s32.totalorder %s21, 0
      %p270 = por %p268, %p269
      %p271 = scmp.ne.s32.totalorder %s263, %s265
      %p272 = scmp.eq.s32.totalorder %s26, 1
      %p273 = por %p271, %p272
      %p274 = scmp.ne.s32.totalorder %s265, %s266
      %p275 = scmp.eq.s32.totalorder %s26, 0
      %p276 = por %p274, %p275
      %p277 = scmp.ne.s32.totalorder %s265, %s266
      %p278 = scmp.eq.s32.totalorder %s27, 1
      %p279 = por %p277, %p278
      %p281 = scmp.ne.s32.totalorder %s266, %s280
      %p282 = scmp.eq.s32.totalorder %s27, 0
      %p283 = por %p281, %p282
      %s284 = ssub.s32 %s28, %s40
      %s285 = ssub.s32 %s29, %s36
      %s286 = sor.u32 %s284, %s285
      %p287 = scmp.eq.s32.totalorder %s286, 0
      %s289 = sadd.s32 %s288, 1
      %s290 = scalar_select %p287, %s288, %s289
      %p293 = pneg %p287
      %p294 = scmp.eq.s32.totalorder %s21, 1
      %p295 = por %p293, %p294
      %p296 = scmp.ne.s32.totalorder %s288, %s291
      %p297 = scmp.eq.s32.totalorder %s21, 0
      %p298 = por %p296, %p297
      %p299 = scmp.ne.s32.totalorder %s288, %s291
      %p300 = scmp.eq.s32.totalorder %s26, 1
      %p301 = por %p299, %p300
      %p302 = scmp.ne.s32.totalorder %s291, %s292
      %p303 = scmp.eq.s32.totalorder %s26, 0
      %p304 = por %p302, %p303
      %p305 = scmp.ne.s32.totalorder %s291, %s292
      %p306 = scmp.eq.s32.totalorder %s27, 1
      %p307 = por %p305, %p306
      %p309 = scmp.ne.s32.totalorder %s292, %s308
      %p310 = scmp.eq.s32.totalorder %s27, 0
      %p311 = por %p309, %p310
      %p312 = scmp.le.s32.totalorder 1, %s21
      %p313 = scmp.lt.s32.totalorder %s21, 3
      %p314 = pnand %p312, %p313
      %p315 = pneg %p314
      // Predicated region
      $region9: #{tpu_custom_call.1} parent=5 // pred_check
        _
      $region10: #{tpu_custom_call.1} parent=5 // pred_check_branch
        %317 = sbr.rel (%p314) target = $region12
      $region11: #{tpu_custom_call.1} parent=5 // pred_region
        %s318 = ssub.s32 %s21, 1
        // Predicated region
        $region13: #{tpu_custom_call.1} parent=11 // pred_check
          %p319 = pneg %p108
        $region14: #{tpu_custom_call.1} parent=11 // pred_check_branch
          %321 = sbr.rel (%p319) target = $region16
        $region15: #{tpu_custom_call.1} parent=11 // pred_region
          _
        $region16: #{tpu_custom_call.1} parent=11 // pred_fallthru
          _
        // Predicated region
        $region17: #{tpu_custom_call.1} parent=11 // pred_check
          %p322 = pneg %p129
        $region18: #{tpu_custom_call.1} parent=11 // pred_check_branch
          %324 = sbr.rel (%p322) target = $region20
        $region19: #{tpu_custom_call.1} parent=11 // pred_region
          _
        $region20: #{tpu_custom_call.1} parent=11 // pred_fallthru
          _
        // Predicated region
        $region21: #{tpu_custom_call.1} parent=11 // pred_check
          %p325 = pneg %p150
        $region22: #{tpu_custom_call.1} parent=11 // pred_check_branch
          %327 = sbr.rel (%p325) target = $region24
        $region23: #{tpu_custom_call.1} parent=11 // pred_region
          _
        $region24: #{tpu_custom_call.1} parent=11 // pred_fallthru
          _
        // Predicated region
        $region25: #{tpu_custom_call.1} parent=11 // pred_check
          %p328 = pneg %p171
        $region26: #{tpu_custom_call.1} parent=11 // pred_check_branch
          %330 = sbr.rel (%p328) target = $region28
        $region27: #{tpu_custom_call.1} parent=11 // pred_region
          _
        $region28: #{tpu_custom_call.1} parent=11 // pred_fallthru
          _
        // Predicated region
        $region29: #{tpu_custom_call.1} parent=11 // pred_check
          %p331 = pneg %p192
        $region30: #{tpu_custom_call.1} parent=11 // pred_check_branch
          %333 = sbr.rel (%p331) target = $region32
        $region31: #{tpu_custom_call.1} parent=11 // pred_region
          _
        $region32: #{tpu_custom_call.1} parent=11 // pred_fallthru
          _
        // Predicated region
        $region33: #{tpu_custom_call.1} parent=11 // pred_check
          %p334 = pneg %p213
        $region34: #{tpu_custom_call.1} parent=11 // pred_check_branch
          %336 = sbr.rel (%p334) target = $region36
        $region35: #{tpu_custom_call.1} parent=11 // pred_region
          _
        $region36: #{tpu_custom_call.1} parent=11 // pred_fallthru
          _
        // Predicated region
        $region37: #{tpu_custom_call.1} parent=11 // pred_check
          %p337 = pneg %p234
        $region38: #{tpu_custom_call.1} parent=11 // pred_check_branch
          %339 = sbr.rel (%p337) target = $region40
        $region39: #{tpu_custom_call.1} parent=11 // pred_region
          _
        $region40: #{tpu_custom_call.1} parent=11 // pred_fallthru
          _
        // Predicated region
        $region41: #{tpu_custom_call.1} parent=11 // pred_check
          %p340 = pneg %p255
        $region42: #{tpu_custom_call.1} parent=11 // pred_check_branch
          %342 = sbr.rel (%p340) target = $region44
        $region43: #{tpu_custom_call.1} parent=11 // pred_region
          _
        $region44: #{tpu_custom_call.1} parent=11 // pred_fallthru
          _
        // Predicated region
        $region45: #{tpu_custom_call.1} parent=11 // pred_check
          %p343 = pneg %p276
        $region46: #{tpu_custom_call.1} parent=11 // pred_check_branch
          %345 = sbr.rel (%p343) target = $region48
        $region47: #{tpu_custom_call.1} parent=11 // pred_region
          _
        $region48: #{tpu_custom_call.1} parent=11 // pred_fallthru
          _
      $region12: #{tpu_custom_call.1} parent=5 // pred_fallthru
        _
      %p346 = scmp.lt.s32.totalorder %s21, 2
      // Predicated region
      $region49: #{tpu_custom_call.1} parent=5 // pred_check
        %p347 = pneg %p346
      $region50: #{tpu_custom_call.1} parent=5 // pred_check_branch
        %349 = sbr.rel (%p347) target = $region52
      $region51: #{tpu_custom_call.1} parent=5 // pred_region
        // Predicated region
        $region53: #{tpu_custom_call.1} parent=51 // pred_check
          %p350 = pneg %p55
        $region54: #{tpu_custom_call.1} parent=51 // pred_check_branch
          %352 = sbr.rel (%p350) target = $region56
        $region55: #{tpu_custom_call.1} parent=51 // pred_region
          %p353 = scmp.lt.s32.totalorder %s28, 1
          %s354 = scalar_select %p353, %s28, 1
          %p355 = scmp.lt.s32.totalorder %s29, 0
          %s356 = scalar_select %p355, %s29, 0
          %s357 = smul.addr %s354, 4
          %s358 = sadd.s32 %s356, %s357
          %s359 = smul.addr %s358, 8
          %s360 = scalar_lea.vmem %s0, %s359
        $region56: #{tpu_custom_call.1} parent=51 // pred_fallthru
          _
        // Predicated region
        $region57: #{tpu_custom_call.1} parent=51 // pred_check
          %p361 = pneg %p81
        $region58: #{tpu_custom_call.1} parent=51 // pred_check_branch
          %363 = sbr.rel (%p361) target = $region60
        $region59: #{tpu_custom_call.1} parent=51 // pred_region
          %p364 = scmp.lt.s32.totalorder %s28, 1
          %s365 = scalar_select %p364, %s28, 1
          %s366 = smul.addr %s365, 4
          %s367 = smul.addr %s366, 8
          %s368 = scalar_lea.vmem %s1, %s367
        $region60: #{tpu_custom_call.1} parent=51 // pred_fallthru
          _
      $region52: #{tpu_custom_call.1} parent=5 // pred_fallthru
        _
      %p369 = scmp.le.s32.totalorder 1, %s21
      %p370 = scmp.lt.s32.totalorder %s21, 3
      %p371 = pnand %p369, %p370
      %p372 = pneg %p371
      // Predicated region
      $region61: #{tpu_custom_call.1} parent=5 // pred_check
        _
      $region62: #{tpu_custom_call.1} parent=5 // pred_check_branch
        %374 = sbr.rel (%p371) target = $region64
      $region63: #{tpu_custom_call.1} parent=5 // pred_region
        %s375 = ssub.s32 %s21, 1
        %p376 = scmp.lt.s32.totalorder %s30, 1
        %s377 = scalar_select %p376, %s30, 1
        %p378 = scmp.lt.s32.totalorder %s31, 0
        %s379 = scalar_select %p378, %s31, 0
        %s380 = smul.addr %s377, 4
        %s381 = sadd.s32 %s379, %s380
        %s382 = smul.addr %s381, 8
        %s383 = scalar_lea.vmem %s0, %s382
        %p384 = pneg %p61
        %p385 = pneg %p58
        %p386 = scmp.lt.s32.totalorder %s30, 1
        %s387 = scalar_select %p386, %s30, 1
        %s388 = smul.addr %s387, 4
        %s389 = smul.addr %s388, 8
        %s390 = scalar_lea.vmem %s1, %s389
        %p391 = pneg %p87
        %p392 = pneg %p84
        %p393 = pneg %p108
        %p394 = pneg %p105
        %p395 = pneg %p129
        %p396 = pneg %p126
        %p397 = pneg %p150
        %p398 = pneg %p147
        %p399 = pneg %p171
        %p400 = pneg %p168
        %p401 = pneg %p192
        %p402 = pneg %p189
        %p403 = pneg %p213
        %p404 = pneg %p210
        %p405 = pneg %p234
        %p406 = pneg %p231
        %p407 = pneg %p255
        %p408 = pneg %p252
        %p409 = pneg %p276
        %p410 = pneg %p273
        %p411 = pneg %p304
        %p412 = pneg %p301
        %s413 = sand.u32 %s291, 1
        %s414 = scalar_lea.sflag [#allocation5], %s413
        %s415 = sand.u32 %s291, 1
        %s416 = smul.addr %s415, 32
        %s417 = scalar_lea.vmem [#allocation4], %s416
        %p418 = scmp.lt.s32.totalorder %s30, 1
        %s419 = scalar_select %p418, %s30, 1
        %p420 = scmp.lt.s32.totalorder %s31, 0
        %s421 = scalar_select %p420, %s31, 0
        %s422 = smul.addr %s419, 4
        %s423 = sadd.s32 %s421, %s422
        %s424 = smul.addr %s423, 8
        %s425 = scalar_lea.vmem %s0, %s424
        %p426 = scmp.lt.s32.totalorder %s30, 1
        %s427 = scalar_select %p426, %s30, 1
        %s428 = smul.addr %s427, 4
        %s429 = smul.addr %s428, 8
        %s430 = scalar_lea.vmem %s1, %s429
        %s431 = sld [smem:[#allocation3]]
        %p432 = scmp.eq.s32.totalorder %s31, 0
        // Predicated region
        $region65: #{tpu_custom_call.1} parent=63 // pred_check
          %p433 = pneg %p432
        $region66: #{tpu_custom_call.1} parent=63 // pred_check_branch
          %435 = sbr.rel (%p433) target = $region68
        $region67: #{tpu_custom_call.1} parent=63 // pred_region
          %v436 = vld [vmem:[%s430] sm:$0xff]
          %v437 = vld [vmem:[%s430 + $0x8] sm:$0xff]
          %v438 = vld [vmem:[%s430 + $0x10] sm:$0xff]
          %v439 = vld [vmem:[%s430 + $0x18] sm:$0xff]
          %vm440 = vcmask 523264
          %v441 = vsel %vm440, %v436, 0.0
          %v442 = vsel %vm440, %v437, 0.0
          %v443 = vadd.f32 %v441, %v442
          %v444 = vsel %vm440, %v438, 0.0
          %v445 = vadd.f32 %v443, %v444
          %v446 = vsel %vm440, %v439, 0.0
          %v447 = vadd.f32 %v445, %v446
          %v448 = vrot.slane %v447, 4
          %v449 = vadd.f32 %v447, %v448
          %v450 = vrot.slane %v449, 2
          %v451 = vadd.f32 %v449, %v450
          %v452 = vrot.slane %v451, 1
          %v453 = vadd.f32 %v451, %v452
          %v454 = vrcp.pop 32.0
          %v455 = vmul.f32 %v453, %v454
          %v456 = vsub.f32 %v436, %v455
          %v457 = vsub.f32 %v437, %v455
          %v458 = vsub.f32 %v438, %v455
          %v459 = vsub.f32 %v439, %v455
          %v460 = vmul.f32 %v456, %v456
          %v461 = vmul.f32 %v457, %v457
          %v462 = vmul.f32 %v458, %v458
          %v463 = vmul.f32 %v459, %v459
          %v464 = vsel %vm440, %v460, 0.0
          %v465 = vsel %vm440, %v461, 0.0
          %v466 = vadd.f32 %v464, %v465
          %v467 = vsel %vm440, %v462, 0.0
          %v468 = vadd.f32 %v466, %v467
          %v469 = vsel %vm440, %v463, 0.0
          %v470 = vadd.f32 %v468, %v469
          %v471 = vrot.slane %v470, 4
          %v472 = vadd.f32 %v470, %v471
          %v473 = vrot.slane %v472, 2
          %v474 = vadd.f32 %v472, %v473
          %v475 = vrot.slane %v474, 1
          %v476 = vadd.f32 %v474, %v475
          %v477 = vmul.f32 %v476, %v454
          %v478 = vadd.f32 %v477, 1e-05
          %v479 = vrsqrt.pop %v478
          %v480 = vmul.f32 %v456, %v479
          %v481 = vmul.f32 %v457, %v479
          %v482 = vmul.f32 %v458, %v479
          %v483 = vmul.f32 %v459, %v479
          %v484 = vld [vmem:[%s6] sm:$0xff]
          %v485 = vld [vmem:[%s6 + $0x8] sm:$0xff]
          %v486 = vld [vmem:[%s6 + $0x10] sm:$0xff]
          %v487 = vld [vmem:[%s6 + $0x18] sm:$0xff]
          %489 = vset.pattern.permute.xlu0 0
          %490 = vperm.xlu0 %489, %v484
          %v491 = vpop.permute.xlu0 %490
          %494 = vset.pattern.permute.xlu0 0
          %495 = vperm.xlu0 %494, %v485
          %v496 = vpop.permute.xlu0 %495
          %499 = vset.pattern.permute.xlu0 0
          %500 = vperm.xlu0 %499, %v486
          %v501 = vpop.permute.xlu0 %500
          %504 = vset.pattern.permute.xlu0 0
          %505 = vperm.xlu0 %504, %v487
          %v506 = vpop.permute.xlu0 %505
          %v508 = vmul.f32 %v480, %v491
          %v509 = vmul.f32 %v481, %v496
          %v510 = vmul.f32 %v482, %v501
          %v511 = vmul.f32 %v483, %v506
          %v512 = vld [vmem:[%s7] sm:$0xff]
          %v513 = vld [vmem:[%s7 + $0x8] sm:$0xff]
          %v514 = vld [vmem:[%s7 + $0x10] sm:$0xff]
          %v515 = vld [vmem:[%s7 + $0x18] sm:$0xff]
          %517 = vset.pattern.permute.xlu0 0
          %518 = vperm.xlu0 %517, %v512
          %v519 = vpop.permute.xlu0 %518
          %522 = vset.pattern.permute.xlu0 0
          %523 = vperm.xlu0 %522, %v513
          %v524 = vpop.permute.xlu0 %523
          %527 = vset.pattern.permute.xlu0 0
          %528 = vperm.xlu0 %527, %v514
          %v529 = vpop.permute.xlu0 %528
          %532 = vset.pattern.permute.xlu0 0
          %533 = vperm.xlu0 %532, %v515
          %v534 = vpop.permute.xlu0 %533
          %v536 = vadd.f32 %v508, %v519
          %v537 = vadd.f32 %v509, %v524
          %v538 = vadd.f32 %v510, %v529
          %v539 = vadd.f32 %v511, %v534
          %v540 = vld [vmem:[%s3] sm:$0xff]
          %v541 = vld [vmem:[%s3 + $0x8] sm:$0xff]
          %v542 = vld [vmem:[%s3 + $0x10] sm:$0xff]
          %v543 = vld [vmem:[%s3 + $0x18] sm:$0xff]
          %v544 = vld [vmem:[%s3 + $0x20] sm:$0xff]
          %v545 = vld [vmem:[%s3 + $0x28] sm:$0xff]
          %v546 = vld [vmem:[%s3 + $0x30] sm:$0xff]
          %v547 = vld [vmem:[%s3 + $0x38] sm:$0xff]
          %vm548 = vcmask 261120
          %v550 = vsel %vm548, %v540, 0
          %v553 = vsel %vm548, %v541, 0
          %v556 = vsel %vm548, %v542, 0
          %v559 = vsel %vm548, %v543, 0
          %v562 = vsel %vm548, %v544, 0
          %v565 = vsel %vm548, %v545, 0
          %v568 = vsel %vm548, %v546, 0
          %v571 = vsel %vm548, %v547, 0
          %573 = vmatprep.subr.mxu0 0.0
          %574 = vmatpush1.msra.mxu0 %v536
          %575 = vmatprep.subr.mxu0 0.0
          %576 = vmatpush1.msra.mxu0 %v537
          %577 = vmatprep.subr.mxu0 0.0
          %578 = vmatpush1.msra.mxu0 %v538
          %579 = vmatprep.subr.mxu0 0.0
          %580 = vmatpush1.msra.mxu0 %v539
          %581 = vmatprep.subr.mxu0 0.0
          %582 = vmatpush1.msra.mxu0 0.0
          %583 = vmatprep.subr.mxu0 0.0
          %584 = vmatpush1.msra.mxu0 0.0
          %585 = vmatprep.subr.mxu0 0.0
          %586 = vmatpush1.msra.mxu0 0.0
          %587 = vmatprep.subr.mxu0 0.0
          %588 = vmatpush1.msra.mxu0 0.0
          %589 = vmatprep.subr.mxu0 0.0
          %590 = vmatpush1.msra.mxu0 0.0
          %591 = vmatprep.subr.mxu0 0.0
          %592 = vmatpush1.msra.mxu0 0.0
          %593 = vmatprep.subr.mxu0 0.0
          %594 = vmatpush1.msra.mxu0 0.0
          %595 = vmatprep.subr.mxu0 0.0
          %596 = vmatpush1.msra.mxu0 0.0
          %597 = vmatprep.subr.mxu0 0.0
          %598 = vmatpush1.msra.mxu0 0.0
          %599 = vmatprep.subr.mxu0 0.0
          %600 = vmatpush1.msra.mxu0 0.0
          %601 = vmatprep.subr.mxu0 0.0
          %602 = vmatpush1.msra.mxu0 0.0
          %603 = vmatprep.subr.mxu0 0.0
          %604 = vmatpush1.msra.mxu0 0.0
          %605 = vmatprep.subr.mxu0 0.0
          %606 = vmatpush1.msra.mxu0 0.0
          %607 = vmatprep.subr.mxu0 0.0
          %608 = vmatpush1.msra.mxu0 0.0
          %609 = vmatprep.subr.mxu0 0.0
          %610 = vmatpush1.msra.mxu0 0.0
          %611 = vmatprep.subr.mxu0 0.0
          %612 = vmatpush1.msra.mxu0 0.0
          %613 = vmatprep.subr.mxu0 0.0
          %614 = vmatpush1.msra.mxu0 0.0
          %615 = vmatprep.subr.mxu0 0.0
          %616 = vmatpush1.msra.mxu0 0.0
          %617 = vmatprep.subr.mxu0 0.0
          %618 = vmatpush1.msra.mxu0 0.0
          %619 = vmatprep.subr.mxu0 0.0
          %620 = vmatpush1.msra.mxu0 0.0
          %621 = vmatprep.subr.mxu0 0.0
          %622 = vmatpush1.msra.mxu0 0.0
          %623 = vmatprep.subr.mxu0 0.0
          %624 = vmatpush1.msra.mxu0 0.0
          %625 = vmatprep.subr.mxu0 0.0
          %626 = vmatpush1.msra.mxu0 0.0
          %627 = vmatprep.subr.mxu0 0.0
          %628 = vmatpush1.msra.mxu0 0.0
          %629 = vmatprep.subr.mxu0 0.0
          %630 = vmatpush1.msra.mxu0 0.0
          %631 = vmatprep.subr.mxu0 0.0
          %632 = vmatpush1.msra.mxu0 0.0
          %633 = vmatprep.subr.mxu0 0.0
          %634 = vmatpush1.msra.mxu0 0.0
          %635 = vmatprep.subr.mxu0 0.0
          %636 = vmatpush1.msra.mxu0 0.0
          %637 = vmatprep.mubr.f32.mxu0 0.0
          %638 = vmatmul.mubr.f32.gmra.mrb[0].mxu0 %v550
          %v639 = vpop.f32.mrb[0].mxu0
          %v640 = vadd.f32 0.0, %v639
          %v641 = vpop.f32.mrb[0].mxu0
          %642 = vmatprep.mubr.f32.mxu0 0.0
          %643 = vmatmul.mubr.f32.gmra.mrb[0].mxu0 %v553
          %v644 = vpop.f32.mrb[0].mxu0
          %v645 = vadd.f32 0.0, %v644
          %v646 = vpop.f32.mrb[0].mxu0
          %647 = vmatprep.mubr.f32.mxu0 0.0
          %648 = vmatmul.mubr.f32.gmra.mrb[0].mxu0 %v556
          %v649 = vpop.f32.mrb[0].mxu0
          %v650 = vadd.f32 0.0, %v649
          %v651 = vpop.f32.mrb[0].mxu0
          %652 = vmatprep.mubr.f32.mxu0 0.0
          %653 = vmatmul.mubr.f32.gmra.mrb[0].mxu0 %v559
          %v654 = vpop.f32.mrb[0].mxu0
          %v655 = vadd.f32 0.0, %v654
          %v656 = vpop.f32.mrb[0].mxu0
          %657 = vmatprep.mubr.f32.mxu0 0.0
          %658 = vmatmul.mubr.f32.gmra.mrb[0].mxu0 %v562
          %v659 = vpop.f32.mrb[0].mxu0
          %v660 = vadd.f32 0.0, %v659
          %v661 = vpop.f32.mrb[0].mxu0
          %662 = vmatprep.mubr.f32.mxu0 0.0
          %663 = vmatmul.mubr.f32.gmra.mrb[0].mxu0 %v565
          %v664 = vpop.f32.mrb[0].mxu0
          %v665 = vadd.f32 0.0, %v664
          %v666 = vpop.f32.mrb[0].mxu0
          %667 = vmatprep.mubr.f32.mxu0 0.0
          %668 = vmatmul.mubr.f32.gmra.mrb[0].mxu0 %v568
          %v669 = vpop.f32.mrb[0].mxu0
          %v670 = vadd.f32 0.0, %v669
          %v671 = vpop.f32.mrb[0].mxu0
          %672 = vmatprep.mubr.f32.mxu0 0.0
          %673 = vmatmul.mubr.f32.gmra.mrb[0].mxu0 %v571
          %v674 = vpop.f32.mrb[0].mxu0
          %v675 = vadd.f32 0.0, %v674
          %v676 = vpop.f32.mrb[0].mxu0
          %677 = vdwg.mxu0
          %v678 = vld [vmem:[%s8] sm:$0xff]
          %v679 = vld [vmem:[%s8 + $0x8] sm:$0xff]
          %vm680 = vcmask 130048
          %v682 = vsel %vm680, %v678, 0
          %684 = vmatprep.subr.mxu0 0.0
          %685 = vmatpush1.msra.mxu0 %v640
          %686 = vmatprep.subr.mxu0 0.0
          %687 = vmatpush1.msra.mxu0 %v645
          %688 = vmatprep.subr.mxu0 0.0
          %689 = vmatpush1.msra.mxu0 0.0
          %690 = vmatprep.subr.mxu0 0.0
          %691 = vmatpush1.msra.mxu0 0.0
          %692 = vmatprep.subr.mxu0 0.0
          %693 = vmatpush1.msra.mxu0 0.0
          %694 = vmatprep.subr.mxu0 0.0
          %695 = vmatpush1.msra.mxu0 0.0
          %696 = vmatprep.subr.mxu0 0.0
          %697 = vmatpush1.msra.mxu0 0.0
          %698 = vmatprep.subr.mxu0 0.0
          %699 = vmatpush1.msra.mxu0 0.0
          %700 = vmatprep.subr.mxu0 0.0
          %701 = vmatpush1.msra.mxu0 0.0
          %702 = vmatprep.subr.mxu0 0.0
          %703 = vmatpush1.msra.mxu0 0.0
          %704 = vmatprep.subr.mxu0 0.0
          %705 = vmatpush1.msra.mxu0 0.0
          %706 = vmatprep.subr.mxu0 0.0
          %707 = vmatpush1.msra.mxu0 0.0
          %708 = vmatprep.subr.mxu0 0.0
          %709 = vmatpush1.msra.mxu0 0.0
          %710 = vmatprep.subr.mxu0 0.0
          %711 = vmatpush1.msra.mxu0 0.0
          %712 = vmatprep.subr.mxu0 0.0
          %713 = vmatpush1.msra.mxu0 0.0
          %714 = vmatprep.subr.mxu0 0.0
          %715 = vmatpush1.msra.mxu0 0.0
          %716 = vmatprep.subr.mxu0 0.0
          %717 = vmatpush1.msra.mxu0 0.0
          %718 = vmatprep.subr.mxu0 0.0
          %719 = vmatpush1.msra.mxu0 0.0
          %720 = vmatprep.subr.mxu0 0.0
          %721 = vmatpush1.msra.mxu0 0.0
          %722 = vmatprep.subr.mxu0 0.0
          %723 = vmatpush1.msra.mxu0 0.0
          %724 = vmatprep.subr.mxu0 0.0
          %725 = vmatpush1.msra.mxu0 0.0
          %726 = vmatprep.subr.mxu0 0.0
          %727 = vmatpush1.msra.mxu0 0.0
          %728 = vmatprep.subr.mxu0 0.0
          %729 = vmatpush1.msra.mxu0 0.0
          %730 = vmatprep.subr.mxu0 0.0
          %731 = vmatpush1.msra.mxu0 0.0
          %732 = vmatprep.subr.mxu0 0.0
          %733 = vmatpush1.msra.mxu0 0.0
          %734 = vmatprep.subr.mxu0 0.0
          %735 = vmatpush1.msra.mxu0 0.0
          %736 = vmatprep.subr.mxu0 0.0
          %737 = vmatpush1.msra.mxu0 0.0
          %738 = vmatprep.subr.mxu0 0.0
          %739 = vmatpush1.msra.mxu0 0.0
          %740 = vmatprep.subr.mxu0 0.0
          %741 = vmatpush1.msra.mxu0 0.0
          %742 = vmatprep.subr.mxu0 0.0
          %743 = vmatpush1.msra.mxu0 0.0
          %744 = vmatprep.subr.mxu0 0.0
          %745 = vmatpush1.msra.mxu0 0.0
          %746 = vmatprep.subr.mxu0 0.0
          %747 = vmatpush1.msra.mxu0 0.0
          %748 = vmatprep.mubr.f32.mxu0 0.0
          %749 = vmatmul.mubr.f32.gmra.mrb[0].mxu0 %v682
          %v750 = vpop.f32.mrb[0].mxu0
          %v751 = vadd.f32 0.0, %v750
          %v752 = vpop.f32.mrb[0].mxu0
          %753 = vdwg.mxu0
          %v755 = vsel %vm680, %v679, 0
          %757 = vmatprep.subr.mxu0 0.0
          %758 = vmatpush1.msra.mxu0 %v650
          %759 = vmatprep.subr.mxu0 0.0
          %760 = vmatpush1.msra.mxu0 %v655
          %761 = vmatprep.subr.mxu0 0.0
          %762 = vmatpush1.msra.mxu0 0.0
          %763 = vmatprep.subr.mxu0 0.0
          %764 = vmatpush1.msra.mxu0 0.0
          %765 = vmatprep.subr.mxu0 0.0
          %766 = vmatpush1.msra.mxu0 0.0
          %767 = vmatprep.subr.mxu0 0.0
          %768 = vmatpush1.msra.mxu0 0.0
          %769 = vmatprep.subr.mxu0 0.0
          %770 = vmatpush1.msra.mxu0 0.0
          %771 = vmatprep.subr.mxu0 0.0
          %772 = vmatpush1.msra.mxu0 0.0
          %773 = vmatprep.subr.mxu0 0.0
          %774 = vmatpush1.msra.mxu0 0.0
          %775 = vmatprep.subr.mxu0 0.0
          %776 = vmatpush1.msra.mxu0 0.0
          %777 = vmatprep.subr.mxu0 0.0
          %778 = vmatpush1.msra.mxu0 0.0
          %779 = vmatprep.subr.mxu0 0.0
          %780 = vmatpush1.msra.mxu0 0.0
          %781 = vmatprep.subr.mxu0 0.0
          %782 = vmatpush1.msra.mxu0 0.0
          %783 = vmatprep.subr.mxu0 0.0
          %784 = vmatpush1.msra.mxu0 0.0
          %785 = vmatprep.subr.mxu0 0.0
          %786 = vmatpush1.msra.mxu0 0.0
          %787 = vmatprep.subr.mxu0 0.0
          %788 = vmatpush1.msra.mxu0 0.0
          %789 = vmatprep.subr.mxu0 0.0
          %790 = vmatpush1.msra.mxu0 0.0
          %791 = vmatprep.subr.mxu0 0.0
          %792 = vmatpush1.msra.mxu0 0.0
          %793 = vmatprep.subr.mxu0 0.0
          %794 = vmatpush1.msra.mxu0 0.0
          %795 = vmatprep.subr.mxu0 0.0
          %796 = vmatpush1.msra.mxu0 0.0
          %797 = vmatprep.subr.mxu0 0.0
          %798 = vmatpush1.msra.mxu0 0.0
          %799 = vmatprep.subr.mxu0 0.0
          %800 = vmatpush1.msra.mxu0 0.0
          %801 = vmatprep.subr.mxu0 0.0
          %802 = vmatpush1.msra.mxu0 0.0
          %803 = vmatprep.subr.mxu0 0.0
          %804 = vmatpush1.msra.mxu0 0.0
          %805 = vmatprep.subr.mxu0 0.0
          %806 = vmatpush1.msra.mxu0 0.0
          %807 = vmatprep.subr.mxu0 0.0
          %808 = vmatpush1.msra.mxu0 0.0
          %809 = vmatprep.subr.mxu0 0.0
          %810 = vmatpush1.msra.mxu0 0.0
          %811 = vmatprep.subr.mxu0 0.0
          %812 = vmatpush1.msra.mxu0 0.0
          %813 = vmatprep.subr.mxu0 0.0
          %814 = vmatpush1.msra.mxu0 0.0
          %815 = vmatprep.subr.mxu0 0.0
          %816 = vmatpush1.msra.mxu0 0.0
          %817 = vmatprep.subr.mxu0 0.0
          %818 = vmatpush1.msra.mxu0 0.0
          %819 = vmatprep.subr.mxu0 0.0
          %820 = vmatpush1.msra.mxu0 0.0
          %821 = vmatprep.mubr.f32.mxu0 0.0
          %822 = vmatmul.mubr.f32.gmra.mrb[0].mxu0 %v755
          %v823 = vpop.f32.mrb[0].mxu0
          %v824 = vadd.f32 0.0, %v823
          %v825 = vpop.f32.mrb[0].mxu0
          %826 = vdwg.mxu0
          %v827 = vstv %s431
          %v828 = vmul.f32 %v751, %v827
          %v829 = vmul.f32 %v824, %v827
          %v830 = vsel %vm440, %v828, -inf
          %831 = vmax.xlane.f32.xlu0 %v830
          %v832 = vpop.xlane.xlu0 %831
          %v833 = vsel %vm440, %v829, -inf
          %834 = vmax.xlane.f32.xlu0 %v833
          %v835 = vpop.xlane.xlu0 %834
          %v836 = vsub.f32 %v828, %v832
          %v837 = vsub.f32 %v829, %v835
          %v838 = vmul.f32 %v836, 1.442695
          %v839 = vpow.pop %v838
          %v840 = vmul.f32 %v837, 1.442695
          %v841 = vpow.pop %v840
          %v842 = vsel %vm440, %v839, 0.0
          %843 = vadd.xlane.f32.xlu0 %v842
          %v844 = vpop.xlane.xlu0 %843
          %v845 = vsel %vm440, %v841, 0.0
          %846 = vadd.xlane.f32.xlu0 %v845
          %v847 = vpop.xlane.xlu0 %846
          %v848 = vrcp.pop %v844
          %v849 = vrcp.pop %v847
          %v850 = vmul.f32 %v839, %v848
          %v851 = vmul.f32 %v841, %v849
          %v853 = vsel %vm440, %v660, 0
          %v856 = vsel %vm440, %v665, 0
          %v859 = vsel %vm440, %v850, 0
          %861 = vmatprep.subr.mxu0 0.0
          %862 = vmatpush1.xpose.msra.mxu0 %v859
          %863 = vmatprep.subr.mxu0 0.0
          %864 = vmatpush1.xpose.msra.mxu0 0.0
          %865 = vmatprep.subr.mxu0 0.0
          %866 = vmatpush1.xpose.msra.mxu0 0.0
          %867 = vmatprep.subr.mxu0 0.0
          %868 = vmatpush1.xpose.msra.mxu0 0.0
          %869 = vmatprep.subr.mxu0 0.0
          %870 = vmatpush1.xpose.msra.mxu0 0.0
          %871 = vmatprep.subr.mxu0 0.0
          %872 = vmatpush1.xpose.msra.mxu0 0.0
          %873 = vmatprep.subr.mxu0 0.0
          %874 = vmatpush1.xpose.msra.mxu0 0.0
          %875 = vmatprep.subr.mxu0 0.0
          %876 = vmatpush1.xpose.msra.mxu0 0.0
          %877 = vmatprep.subr.mxu0 0.0
          %878 = vmatpush1.xpose.msra.mxu0 0.0
          %879 = vmatprep.subr.mxu0 0.0
          %880 = vmatpush1.xpose.msra.mxu0 0.0
          %881 = vmatprep.subr.mxu0 0.0
          %882 = vmatpush1.xpose.msra.mxu0 0.0
          %883 = vmatprep.subr.mxu0 0.0
          %884 = vmatpush1.xpose.msra.mxu0 0.0
          %885 = vmatprep.subr.mxu0 0.0
          %886 = vmatpush1.xpose.msra.mxu0 0.0
          %887 = vmatprep.subr.mxu0 0.0
          %888 = vmatpush1.xpose.msra.mxu0 0.0
          %889 = vmatprep.subr.mxu0 0.0
          %890 = vmatpush1.xpose.msra.mxu0 0.0
          %891 = vmatprep.subr.mxu0 0.0
          %892 = vmatpush1.xpose.msra.mxu0 0.0
          %893 = vmatprep.subr.mxu0 0.0
          %894 = vmatpush1.xpose.msra.mxu0 0.0
          %895 = vmatprep.subr.mxu0 0.0
          %896 = vmatpush1.xpose.msra.mxu0 0.0
          %897 = vmatprep.subr.mxu0 0.0
          %898 = vmatpush1.xpose.msra.mxu0 0.0
          %899 = vmatprep.subr.mxu0 0.0
          %900 = vmatpush1.xpose.msra.mxu0 0.0
          %901 = vmatprep.subr.mxu0 0.0
          %902 = vmatpush1.xpose.msra.mxu0 0.0
          %903 = vmatprep.subr.mxu0 0.0
          %904 = vmatpush1.xpose.msra.mxu0 0.0
          %905 = vmatprep.subr.mxu0 0.0
          %906 = vmatpush1.xpose.msra.mxu0 0.0
          %907 = vmatprep.subr.mxu0 0.0
          %908 = vmatpush1.xpose.msra.mxu0 0.0
          %909 = vmatprep.subr.mxu0 0.0
          %910 = vmatpush1.xpose.msra.mxu0 0.0
          %911 = vmatprep.subr.mxu0 0.0
          %912 = vmatpush1.xpose.msra.mxu0 0.0
          %913 = vmatprep.subr.mxu0 0.0
          %914 = vmatpush1.xpose.msra.mxu0 0.0
          %915 = vmatprep.subr.mxu0 0.0
          %916 = vmatpush1.xpose.msra.mxu0 0.0
          %917 = vmatprep.subr.mxu0 0.0
          %918 = vmatpush1.xpose.msra.mxu0 0.0
          %919 = vmatprep.subr.mxu0 0.0
          %920 = vmatpush1.xpose.msra.mxu0 0.0
          %921 = vmatprep.subr.mxu0 0.0
          %922 = vmatpush1.xpose.msra.mxu0 0.0
          %923 = vmatprep.subr.mxu0 0.0
          %924 = vmatpush1.xpose.msra.mxu0 0.0
          %925 = vmatprep.mubr.f32.mxu0 0.0
          %926 = vmatmul.mubr.f32.gmra.mrb[0].mxu0 %v853
          %v927 = vpop.f32.mrb[0].mxu0
          %v928 = vadd.f32 0.0, %v927
          %v929 = vpop.f32.mrb[0].mxu0
          %930 = vmatprep.mubr.f32.mxu0 0.0
          %931 = vmatmul.mubr.f32.gmra.mrb[0].mxu0 %v856
          %v932 = vpop.f32.mrb[0].mxu0
          %v933 = vadd.f32 0.0, %v932
          %v934 = vpop.f32.mrb[0].mxu0
          %935 = vdwg.mxu0
          %v937 = vsel %vm440, %v670, 0
          %v940 = vsel %vm440, %v675, 0
          %v943 = vsel %vm440, %v851, 0
          %945 = vmatprep.subr.mxu0 0.0
          %946 = vmatpush1.xpose.msra.mxu0 %v943
          %947 = vmatprep.subr.mxu0 0.0
          %948 = vmatpush1.xpose.msra.mxu0 0.0
          %949 = vmatprep.subr.mxu0 0.0
          %950 = vmatpush1.xpose.msra.mxu0 0.0
          %951 = vmatprep.subr.mxu0 0.0
          %952 = vmatpush1.xpose.msra.mxu0 0.0
          %953 = vmatprep.subr.mxu0 0.0
          %954 = vmatpush1.xpose.msra.mxu0 0.0
          %955 = vmatprep.subr.mxu0 0.0
          %956 = vmatpush1.xpose.msra.mxu0 0.0
          %957 = vmatprep.subr.mxu0 0.0
          %958 = vmatpush1.xpose.msra.mxu0 0.0
          %959 = vmatprep.subr.mxu0 0.0
          %960 = vmatpush1.xpose.msra.mxu0 0.0
          %961 = vmatprep.subr.mxu0 0.0
          %962 = vmatpush1.xpose.msra.mxu0 0.0
          %963 = vmatprep.subr.mxu0 0.0
          %964 = vmatpush1.xpose.msra.mxu0 0.0
          %965 = vmatprep.subr.mxu0 0.0
          %966 = vmatpush1.xpose.msra.mxu0 0.0
          %967 = vmatprep.subr.mxu0 0.0
          %968 = vmatpush1.xpose.msra.mxu0 0.0
          %969 = vmatprep.subr.mxu0 0.0
          %970 = vmatpush1.xpose.msra.mxu0 0.0
          %971 = vmatprep.subr.mxu0 0.0
          %972 = vmatpush1.xpose.msra.mxu0 0.0
          %973 = vmatprep.subr.mxu0 0.0
          %974 = vmatpush1.xpose.msra.mxu0 0.0
          %975 = vmatprep.subr.mxu0 0.0
          %976 = vmatpush1.xpose.msra.mxu0 0.0
          %977 = vmatprep.subr.mxu0 0.0
          %978 = vmatpush1.xpose.msra.mxu0 0.0
          %979 = vmatprep.subr.mxu0 0.0
          %980 = vmatpush1.xpose.msra.mxu0 0.0
          %981 = vmatprep.subr.mxu0 0.0
          %982 = vmatpush1.xpose.msra.mxu0 0.0
          %983 = vmatprep.subr.mxu0 0.0
          %984 = vmatpush1.xpose.msra.mxu0 0.0
          %985 = vmatprep.subr.mxu0 0.0
          %986 = vmatpush1.xpose.msra.mxu0 0.0
          %987 = vmatprep.subr.mxu0 0.0
          %988 = vmatpush1.xpose.msra.mxu0 0.0
          %989 = vmatprep.subr.mxu0 0.0
          %990 = vmatpush1.xpose.msra.mxu0 0.0
          %991 = vmatprep.subr.mxu0 0.0
          %992 = vmatpush1.xpose.msra.mxu0 0.0
          %993 = vmatprep.subr.mxu0 0.0
          %994 = vmatpush1.xpose.msra.mxu0 0.0
          %995 = vmatprep.subr.mxu0 0.0
          %996 = vmatpush1.xpose.msra.mxu0 0.0
          %997 = vmatprep.subr.mxu0 0.0
          %998 = vmatpush1.xpose.msra.mxu0 0.0
          %999 = vmatprep.subr.mxu0 0.0
          %1000 = vmatpush1.xpose.msra.mxu0 0.0
          %1001 = vmatprep.subr.mxu0 0.0
          %1002 = vmatpush1.xpose.msra.mxu0 0.0
          %1003 = vmatprep.subr.mxu0 0.0
          %1004 = vmatpush1.xpose.msra.mxu0 0.0
          %1005 = vmatprep.subr.mxu0 0.0
          %1006 = vmatpush1.xpose.msra.mxu0 0.0
          %1007 = vmatprep.subr.mxu0 0.0
          %1008 = vmatpush1.xpose.msra.mxu0 0.0
          %1009 = vmatprep.mubr.f32.mxu0 0.0
          %1010 = vmatmul.mubr.f32.gmra.mrb[0].mxu0 %v937
          %v1011 = vpop.f32.mrb[0].mxu0
          %v1012 = vadd.f32 0.0, %v1011
          %v1013 = vpop.f32.mrb[0].mxu0
          %1014 = vmatprep.mubr.f32.mxu0 0.0
          %1015 = vmatmul.mubr.f32.gmra.mrb[0].mxu0 %v940
          %v1016 = vpop.f32.mrb[0].mxu0
          %v1017 = vadd.f32 0.0, %v1016
          %v1018 = vpop.f32.mrb[0].mxu0
          %1019 = vdwg.mxu0
          %vm1020 = vcmask 64512
          %1021 = vst.msk [vmem:[#allocation2] sm:$0xff] %vm1020, %v928
          %1022 = vst.msk [vmem:[#allocation2 + $0x8] sm:$0xff] %vm1020, %v933
          %1023 = vst.msk [vmem:[#allocation2 + $0x10] sm:$0xff] %vm1020, %v1012
          %1024 = vst.msk [vmem:[#allocation2 + $0x18] sm:$0xff] %vm1020, %v1017
        $region68: #{tpu_custom_call.1} parent=63 // pred_fallthru
          _
        %v1025 = vld [vmem:[%s425] sm:$0xff]
        %v1026 = vld [vmem:[%s425 + $0x8] sm:$0xff]
        %v1027 = vld [vmem:[%s425 + $0x10] sm:$0xff]
        %v1028 = vld [vmem:[%s425 + $0x18] sm:$0xff]
        %v1029 = vld [vmem:[%s2] sm:$0xff]
        %v1030 = vld [vmem:[%s2 + $0x8] sm:$0xff]
        %v1031 = vld [vmem:[%s2 + $0x10] sm:$0xff]
        %v1032 = vld [vmem:[%s2 + $0x18] sm:$0xff]
        %vm1033 = vcmask 261120
        %v1035 = vsel %vm1033, %v1029, 0
        %v1038 = vsel %vm1033, %v1030, 0
        %v1041 = vsel %vm1033, %v1031, 0
        %v1044 = vsel %vm1033, %v1032, 0
        %1046 = vmatprep.subr.mxu0 0.0
        %1047 = vmatpush1.msra.mxu0 %v1025
        %1048 = vmatprep.subr.mxu0 0.0
        %1049 = vmatpush1.msra.mxu0 %v1026
        %1050 = vmatprep.subr.mxu0 0.0
        %1051 = vmatpush1.msra.mxu0 %v1027
        %1052 = vmatprep.subr.mxu0 0.0
        %1053 = vmatpush1.msra.mxu0 %v1028
        %1054 = vmatprep.subr.mxu0 0.0
        %1055 = vmatpush1.msra.mxu0 0.0
        %1056 = vmatprep.subr.mxu0 0.0
        %1057 = vmatpush1.msra.mxu0 0.0
        %1058 = vmatprep.subr.mxu0 0.0
        %1059 = vmatpush1.msra.mxu0 0.0
        %1060 = vmatprep.subr.mxu0 0.0
        %1061 = vmatpush1.msra.mxu0 0.0
        %1062 = vmatprep.subr.mxu0 0.0
        %1063 = vmatpush1.msra.mxu0 0.0
        %1064 = vmatprep.subr.mxu0 0.0
        %1065 = vmatpush1.msra.mxu0 0.0
        %1066 = vmatprep.subr.mxu0 0.0
        %1067 = vmatpush1.msra.mxu0 0.0
        %1068 = vmatprep.subr.mxu0 0.0
        %1069 = vmatpush1.msra.mxu0 0.0
        %1070 = vmatprep.subr.mxu0 0.0
        %1071 = vmatpush1.msra.mxu0 0.0
        %1072 = vmatprep.subr.mxu0 0.0
        %1073 = vmatpush1.msra.mxu0 0.0
        %1074 = vmatprep.subr.mxu0 0.0
        %1075 = vmatpush1.msra.mxu0 0.0
        %1076 = vmatprep.subr.mxu0 0.0
        %1077 = vmatpush1.msra.mxu0 0.0
        %1078 = vmatprep.subr.mxu0 0.0
        %1079 = vmatpush1.msra.mxu0 0.0
        %1080 = vmatprep.subr.mxu0 0.0
        %1081 = vmatpush1.msra.mxu0 0.0
        %1082 = vmatprep.subr.mxu0 0.0
        %1083 = vmatpush1.msra.mxu0 0.0
        %1084 = vmatprep.subr.mxu0 0.0
        %1085 = vmatpush1.msra.mxu0 0.0
        %1086 = vmatprep.subr.mxu0 0.0
        %1087 = vmatpush1.msra.mxu0 0.0
        %1088 = vmatprep.subr.mxu0 0.0
        %1089 = vmatpush1.msra.mxu0 0.0
        %1090 = vmatprep.subr.mxu0 0.0
        %1091 = vmatpush1.msra.mxu0 0.0
        %1092 = vmatprep.subr.mxu0 0.0
        %1093 = vmatpush1.msra.mxu0 0.0
        %1094 = vmatprep.subr.mxu0 0.0
        %1095 = vmatpush1.msra.mxu0 0.0
        %1096 = vmatprep.subr.mxu0 0.0
        %1097 = vmatpush1.msra.mxu0 0.0
        %1098 = vmatprep.subr.mxu0 0.0
        %1099 = vmatpush1.msra.mxu0 0.0
        %1100 = vmatprep.subr.mxu0 0.0
        %1101 = vmatpush1.msra.mxu0 0.0
        %1102 = vmatprep.subr.mxu0 0.0
        %1103 = vmatpush1.msra.mxu0 0.0
        %1104 = vmatprep.subr.mxu0 0.0
        %1105 = vmatpush1.msra.mxu0 0.0
        %1106 = vmatprep.subr.mxu0 0.0
        %1107 = vmatpush1.msra.mxu0 0.0
        %1108 = vmatprep.subr.mxu0 0.0
        %1109 = vmatpush1.msra.mxu0 0.0
        %1110 = vmatprep.mubr.f32.mxu0 0.0
        %1111 = vmatmul.mubr.f32.gmra.mrb[0].mxu0 %v1035
        %v1112 = vpop.f32.mrb[0].mxu0
        %v1113 = vadd.f32 0.0, %v1112
        %v1114 = vpop.f32.mrb[0].mxu0
        %1115 = vmatprep.mubr.f32.mxu0 0.0
        %1116 = vmatmul.mubr.f32.gmra.mrb[0].mxu0 %v1038
        %v1117 = vpop.f32.mrb[0].mxu0
        %v1118 = vadd.f32 0.0, %v1117
        %v1119 = vpop.f32.mrb[0].mxu0
        %1120 = vmatprep.mubr.f32.mxu0 0.0
        %1121 = vmatmul.mubr.f32.gmra.mrb[0].mxu0 %v1041
        %v1122 = vpop.f32.mrb[0].mxu0
        %v1123 = vadd.f32 0.0, %v1122
        %v1124 = vpop.f32.mrb[0].mxu0
        %1125 = vmatprep.mubr.f32.mxu0 0.0
        %1126 = vmatmul.mubr.f32.gmra.mrb[0].mxu0 %v1044
        %v1127 = vpop.f32.mrb[0].mxu0
        %v1128 = vadd.f32 0.0, %v1127
        %v1129 = vpop.f32.mrb[0].mxu0
        %1130 = vdwg.mxu0
        %v1131 = vld [vmem:[%s9] sm:$0xff]
        %v1132 = vld [vmem:[%s9 + $0x8] sm:$0xff]
        %vm1133 = vcmask 130048
        %v1135 = vsel %vm1133, %v1131, 0
        %1137 = vmatprep.subr.mxu0 0.0
        %1138 = vmatpush1.msra.mxu0 %v1113
        %1139 = vmatprep.subr.mxu0 0.0
        %1140 = vmatpush1.msra.mxu0 %v1118
        %1141 = vmatprep.subr.mxu0 0.0
        %1142 = vmatpush1.msra.mxu0 0.0
        %1143 = vmatprep.subr.mxu0 0.0
        %1144 = vmatpush1.msra.mxu0 0.0
        %1145 = vmatprep.subr.mxu0 0.0
        %1146 = vmatpush1.msra.mxu0 0.0
        %1147 = vmatprep.subr.mxu0 0.0
        %1148 = vmatpush1.msra.mxu0 0.0
        %1149 = vmatprep.subr.mxu0 0.0
        %1150 = vmatpush1.msra.mxu0 0.0
        %1151 = vmatprep.subr.mxu0 0.0
        %1152 = vmatpush1.msra.mxu0 0.0
        %1153 = vmatprep.subr.mxu0 0.0
        %1154 = vmatpush1.msra.mxu0 0.0
        %1155 = vmatprep.subr.mxu0 0.0
        %1156 = vmatpush1.msra.mxu0 0.0
        %1157 = vmatprep.subr.mxu0 0.0
        %1158 = vmatpush1.msra.mxu0 0.0
        %1159 = vmatprep.subr.mxu0 0.0
        %1160 = vmatpush1.msra.mxu0 0.0
        %1161 = vmatprep.subr.mxu0 0.0
        %1162 = vmatpush1.msra.mxu0 0.0
        %1163 = vmatprep.subr.mxu0 0.0
        %1164 = vmatpush1.msra.mxu0 0.0
        %1165 = vmatprep.subr.mxu0 0.0
        %1166 = vmatpush1.msra.mxu0 0.0
        %1167 = vmatprep.subr.mxu0 0.0
        %1168 = vmatpush1.msra.mxu0 0.0
        %1169 = vmatprep.subr.mxu0 0.0
        %1170 = vmatpush1.msra.mxu0 0.0
        %1171 = vmatprep.subr.mxu0 0.0
        %1172 = vmatpush1.msra.mxu0 0.0
        %1173 = vmatprep.subr.mxu0 0.0
        %1174 = vmatpush1.msra.mxu0 0.0
        %1175 = vmatprep.subr.mxu0 0.0
        %1176 = vmatpush1.msra.mxu0 0.0
        %1177 = vmatprep.subr.mxu0 0.0
        %1178 = vmatpush1.msra.mxu0 0.0
        %1179 = vmatprep.subr.mxu0 0.0
        %1180 = vmatpush1.msra.mxu0 0.0
        %1181 = vmatprep.subr.mxu0 0.0
        %1182 = vmatpush1.msra.mxu0 0.0
        %1183 = vmatprep.subr.mxu0 0.0
        %1184 = vmatpush1.msra.mxu0 0.0
        %1185 = vmatprep.subr.mxu0 0.0
        %1186 = vmatpush1.msra.mxu0 0.0
        %1187 = vmatprep.subr.mxu0 0.0
        %1188 = vmatpush1.msra.mxu0 0.0
        %1189 = vmatprep.subr.mxu0 0.0
        %1190 = vmatpush1.msra.mxu0 0.0
        %1191 = vmatprep.subr.mxu0 0.0
        %1192 = vmatpush1.msra.mxu0 0.0
        %1193 = vmatprep.subr.mxu0 0.0
        %1194 = vmatpush1.msra.mxu0 0.0
        %1195 = vmatprep.subr.mxu0 0.0
        %1196 = vmatpush1.msra.mxu0 0.0
        %1197 = vmatprep.subr.mxu0 0.0
        %1198 = vmatpush1.msra.mxu0 0.0
        %1199 = vmatprep.subr.mxu0 0.0
        %1200 = vmatpush1.msra.mxu0 0.0
        %1201 = vmatprep.mubr.f32.mxu0 0.0
        %1202 = vmatmul.mubr.f32.gmra.mrb[0].mxu0 %v1135
        %v1203 = vpop.f32.mrb[0].mxu0
        %v1204 = vadd.f32 0.0, %v1203
        %v1205 = vpop.f32.mrb[0].mxu0
        %1206 = vdwg.mxu0
        %v1208 = vsel %vm1133, %v1132, 0
        %1210 = vmatprep.subr.mxu0 0.0
        %1211 = vmatpush1.msra.mxu0 %v1123
        %1212 = vmatprep.subr.mxu0 0.0
        %1213 = vmatpush1.msra.mxu0 %v1128
        %1214 = vmatprep.subr.mxu0 0.0
        %1215 = vmatpush1.msra.mxu0 0.0
        %1216 = vmatprep.subr.mxu0 0.0
        %1217 = vmatpush1.msra.mxu0 0.0
        %1218 = vmatprep.subr.mxu0 0.0
        %1219 = vmatpush1.msra.mxu0 0.0
        %1220 = vmatprep.subr.mxu0 0.0
        %1221 = vmatpush1.msra.mxu0 0.0
        %1222 = vmatprep.subr.mxu0 0.0
        %1223 = vmatpush1.msra.mxu0 0.0
        %1224 = vmatprep.subr.mxu0 0.0
        %1225 = vmatpush1.msra.mxu0 0.0
        %1226 = vmatprep.subr.mxu0 0.0
        %1227 = vmatpush1.msra.mxu0 0.0
        %1228 = vmatprep.subr.mxu0 0.0
        %1229 = vmatpush1.msra.mxu0 0.0
        %1230 = vmatprep.subr.mxu0 0.0
        %1231 = vmatpush1.msra.mxu0 0.0
        %1232 = vmatprep.subr.mxu0 0.0
        %1233 = vmatpush1.msra.mxu0 0.0
        %1234 = vmatprep.subr.mxu0 0.0
        %1235 = vmatpush1.msra.mxu0 0.0
        %1236 = vmatprep.subr.mxu0 0.0
        %1237 = vmatpush1.msra.mxu0 0.0
        %1238 = vmatprep.subr.mxu0 0.0
        %1239 = vmatpush1.msra.mxu0 0.0
        %1240 = vmatprep.subr.mxu0 0.0
        %1241 = vmatpush1.msra.mxu0 0.0
        %1242 = vmatprep.subr.mxu0 0.0
        %1243 = vmatpush1.msra.mxu0 0.0
        %1244 = vmatprep.subr.mxu0 0.0
        %1245 = vmatpush1.msra.mxu0 0.0
        %1246 = vmatprep.subr.mxu0 0.0
        %1247 = vmatpush1.msra.mxu0 0.0
        %1248 = vmatprep.subr.mxu0 0.0
        %1249 = vmatpush1.msra.mxu0 0.0
        %1250 = vmatprep.subr.mxu0 0.0
        %1251 = vmatpush1.msra.mxu0 0.0
        %1252 = vmatprep.subr.mxu0 0.0
        %1253 = vmatpush1.msra.mxu0 0.0
        %1254 = vmatprep.subr.mxu0 0.0
        %1255 = vmatpush1.msra.mxu0 0.0
        %1256 = vmatprep.subr.mxu0 0.0
        %1257 = vmatpush1.msra.mxu0 0.0
        %1258 = vmatprep.subr.mxu0 0.0
        %1259 = vmatpush1.msra.mxu0 0.0
        %1260 = vmatprep.subr.mxu0 0.0
        %1261 = vmatpush1.msra.mxu0 0.0
        %1262 = vmatprep.subr.mxu0 0.0
        %1263 = vmatpush1.msra.mxu0 0.0
        %1264 = vmatprep.subr.mxu0 0.0
        %1265 = vmatpush1.msra.mxu0 0.0
        %1266 = vmatprep.subr.mxu0 0.0
        %1267 = vmatpush1.msra.mxu0 0.0
        %1268 = vmatprep.subr.mxu0 0.0
        %1269 = vmatpush1.msra.mxu0 0.0
        %1270 = vmatprep.subr.mxu0 0.0
        %1271 = vmatpush1.msra.mxu0 0.0
        %1272 = vmatprep.subr.mxu0 0.0
        %1273 = vmatpush1.msra.mxu0 0.0
        %1274 = vmatprep.mubr.f32.mxu0 0.0
        %1275 = vmatmul.mubr.f32.gmra.mrb[0].mxu0 %v1208
        %v1276 = vpop.f32.mrb[0].mxu0
        %v1277 = vadd.f32 0.0, %v1276
        %v1278 = vpop.f32.mrb[0].mxu0
        %1279 = vdwg.mxu0
        %v1280 = vstv %s431
        %v1281 = vmul.f32 %v1204, %v1280
        %v1282 = vmul.f32 %v1277, %v1280
        %vm1283 = vcmask 523264
        %v1284 = vsel %vm1283, %v1281, -inf
        %v1285 = vrot.slane %v1284, 4
        %v1286 = vmax.f32 %v1284, %v1285
        %v1287 = vrot.slane %v1286, 2
        %v1288 = vmax.f32 %v1286, %v1287
        %v1289 = vrot.slane %v1288, 1
        %v1290 = vmax.f32 %v1288, %v1289
        %v1291 = vsel %vm1283, %v1282, -inf
        %v1292 = vrot.slane %v1291, 4
        %v1293 = vmax.f32 %v1291, %v1292
        %v1294 = vrot.slane %v1293, 2
        %v1295 = vmax.f32 %v1293, %v1294
        %v1296 = vrot.slane %v1295, 1
        %v1297 = vmax.f32 %v1295, %v1296
        %v1298 = vsub.f32 %v1281, %v1290
        %v1299 = vsub.f32 %v1282, %v1297
        %v1300 = vmul.f32 %v1298, 1.442695
        %v1301 = vpow.pop %v1300
        %v1302 = vmul.f32 %v1299, 1.442695
        %v1303 = vpow.pop %v1302
        %v1304 = vsel %vm1283, %v1301, 0.0
        %v1305 = vrot.slane %v1304, 4
        %v1306 = vadd.f32 %v1304, %v1305
        %v1307 = vrot.slane %v1306, 2
        %v1308 = vadd.f32 %v1306, %v1307
        %v1309 = vrot.slane %v1308, 1
        %v1310 = vadd.f32 %v1308, %v1309
        %v1311 = vsel %vm1283, %v1303, 0.0
        %v1312 = vrot.slane %v1311, 4
        %v1313 = vadd.f32 %v1311, %v1312
        %v1314 = vrot.slane %v1313, 2
        %v1315 = vadd.f32 %v1313, %v1314
        %v1316 = vrot.slane %v1315, 1
        %v1317 = vadd.f32 %v1315, %v1316
        %v1318 = vrcp.pop %v1310
        %v1319 = vrcp.pop %v1317
        %v1320 = vmul.f32 %v1301, %v1318
        %v1321 = vmul.f32 %v1303, %v1319
        %v1322 = vld [vmem:[#allocation2] sm:$0xff]
        %v1323 = vld [vmem:[#allocation2 + $0x8] sm:$0xff]
        %v1324 = vld [vmem:[#allocation2 + $0x10] sm:$0xff]
        %v1325 = vld [vmem:[#allocation2 + $0x18] sm:$0xff]
        %vm1326 = vcmask 64512
        %v1328 = vsel %vm1326, %v1322, 0
        %v1331 = vsel %vm1326, %v1323, 0
        %1333 = vmatprep.subr.mxu0 0.0
        %1334 = vmatpush1.msra.mxu0 %v1320
        %1335 = vmatprep.subr.mxu0 0.0
        %1336 = vmatpush1.msra.mxu0 0.0
        %1337 = vmatprep.subr.mxu0 0.0
        %1338 = vmatpush1.msra.mxu0 0.0
        %1339 = vmatprep.subr.mxu0 0.0
        %1340 = vmatpush1.msra.mxu0 0.0
        %1341 = vmatprep.subr.mxu0 0.0
        %1342 = vmatpush1.msra.mxu0 0.0
        %1343 = vmatprep.subr.mxu0 0.0
        %1344 = vmatpush1.msra.mxu0 0.0
        %1345 = vmatprep.subr.mxu0 0.0
        %1346 = vmatpush1.msra.mxu0 0.0
        %1347 = vmatprep.subr.mxu0 0.0
        %1348 = vmatpush1.msra.mxu0 0.0
        %1349 = vmatprep.subr.mxu0 0.0
        %1350 = vmatpush1.msra.mxu0 0.0
        %1351 = vmatprep.subr.mxu0 0.0
        %1352 = vmatpush1.msra.mxu0 0.0
        %1353 = vmatprep.subr.mxu0 0.0
        %1354 = vmatpush1.msra.mxu0 0.0
        %1355 = vmatprep.subr.mxu0 0.0
        %1356 = vmatpush1.msra.mxu0 0.0
        %1357 = vmatprep.subr.mxu0 0.0
        %1358 = vmatpush1.msra.mxu0 0.0
        %1359 = vmatprep.subr.mxu0 0.0
        %1360 = vmatpush1.msra.mxu0 0.0
        %1361 = vmatprep.subr.mxu0 0.0
        %1362 = vmatpush1.msra.mxu0 0.0
        %1363 = vmatprep.subr.mxu0 0.0
        %1364 = vmatpush1.msra.mxu0 0.0
        %1365 = vmatprep.subr.mxu0 0.0
        %1366 = vmatpush1.msra.mxu0 0.0
        %1367 = vmatprep.subr.mxu0 0.0
        %1368 = vmatpush1.msra.mxu0 0.0
        %1369 = vmatprep.subr.mxu0 0.0
        %1370 = vmatpush1.msra.mxu0 0.0
        %1371 = vmatprep.subr.mxu0 0.0
        %1372 = vmatpush1.msra.mxu0 0.0
        %1373 = vmatprep.subr.mxu0 0.0
        %1374 = vmatpush1.msra.mxu0 0.0
        %1375 = vmatprep.subr.mxu0 0.0
        %1376 = vmatpush1.msra.mxu0 0.0
        %1377 = vmatprep.subr.mxu0 0.0
        %1378 = vmatpush1.msra.mxu0 0.0
        %1379 = vmatprep.subr.mxu0 0.0
        %1380 = vmatpush1.msra.mxu0 0.0
        %1381 = vmatprep.subr.mxu0 0.0
        %1382 = vmatpush1.msra.mxu0 0.0
        %1383 = vmatprep.subr.mxu0 0.0
        %1384 = vmatpush1.msra.mxu0 0.0
        %1385 = vmatprep.subr.mxu0 0.0
        %1386 = vmatpush1.msra.mxu0 0.0
        %1387 = vmatprep.subr.mxu0 0.0
        %1388 = vmatpush1.msra.mxu0 0.0
        %1389 = vmatprep.subr.mxu0 0.0
        %1390 = vmatpush1.msra.mxu0 0.0
        %1391 = vmatprep.subr.mxu0 0.0
        %1392 = vmatpush1.msra.mxu0 0.0
        %1393 = vmatprep.subr.mxu0 0.0
        %1394 = vmatpush1.msra.mxu0 0.0
        %1395 = vmatprep.subr.mxu0 0.0
        %1396 = vmatpush1.msra.mxu0 0.0
        %1397 = vmatprep.mubr.f32.mxu0 0.0
        %1398 = vmatmul.mubr.f32.gmra.mrb[0].mxu0 %v1328
        %v1399 = vpop.f32.mrb[0].mxu0
        %v1400 = vadd.f32 0.0, %v1399
        %v1401 = vpop.f32.mrb[0].mxu0
        %1402 = vmatprep.mubr.f32.mxu0 0.0
        %1403 = vmatmul.mubr.f32.gmra.mrb[0].mxu0 %v1331
        %v1404 = vpop.f32.mrb[0].mxu0
        %v1405 = vadd.f32 0.0, %v1404
        %v1406 = vpop.f32.mrb[0].mxu0
        %1407 = vdwg.mxu0
        %v1409 = vsel %vm1326, %v1324, 0
        %v1412 = vsel %vm1326, %v1325, 0
        %1414 = vmatprep.subr.mxu0 0.0
        %1415 = vmatpush1.msra.mxu0 %v1321
        %1416 = vmatprep.subr.mxu0 0.0
        %1417 = vmatpush1.msra.mxu0 0.0
        %1418 = vmatprep.subr.mxu0 0.0
        %1419 = vmatpush1.msra.mxu0 0.0
        %1420 = vmatprep.subr.mxu0 0.0
        %1421 = vmatpush1.msra.mxu0 0.0
        %1422 = vmatprep.subr.mxu0 0.0
        %1423 = vmatpush1.msra.mxu0 0.0
        %1424 = vmatprep.subr.mxu0 0.0
        %1425 = vmatpush1.msra.mxu0 0.0
        %1426 = vmatprep.subr.mxu0 0.0
        %1427 = vmatpush1.msra.mxu0 0.0
        %1428 = vmatprep.subr.mxu0 0.0
        %1429 = vmatpush1.msra.mxu0 0.0
        %1430 = vmatprep.subr.mxu0 0.0
        %1431 = vmatpush1.msra.mxu0 0.0
        %1432 = vmatprep.subr.mxu0 0.0
        %1433 = vmatpush1.msra.mxu0 0.0
        %1434 = vmatprep.subr.mxu0 0.0
        %1435 = vmatpush1.msra.mxu0 0.0
        %1436 = vmatprep.subr.mxu0 0.0
        %1437 = vmatpush1.msra.mxu0 0.0
        %1438 = vmatprep.subr.mxu0 0.0
        %1439 = vmatpush1.msra.mxu0 0.0
        %1440 = vmatprep.subr.mxu0 0.0
        %1441 = vmatpush1.msra.mxu0 0.0
        %1442 = vmatprep.subr.mxu0 0.0
        %1443 = vmatpush1.msra.mxu0 0.0
        %1444 = vmatprep.subr.mxu0 0.0
        %1445 = vmatpush1.msra.mxu0 0.0
        %1446 = vmatprep.subr.mxu0 0.0
        %1447 = vmatpush1.msra.mxu0 0.0
        %1448 = vmatprep.subr.mxu0 0.0
        %1449 = vmatpush1.msra.mxu0 0.0
        %1450 = vmatprep.subr.mxu0 0.0
        %1451 = vmatpush1.msra.mxu0 0.0
        %1452 = vmatprep.subr.mxu0 0.0
        %1453 = vmatpush1.msra.mxu0 0.0
        %1454 = vmatprep.subr.mxu0 0.0
        %1455 = vmatpush1.msra.mxu0 0.0
        %1456 = vmatprep.subr.mxu0 0.0
        %1457 = vmatpush1.msra.mxu0 0.0
        %1458 = vmatprep.subr.mxu0 0.0
        %1459 = vmatpush1.msra.mxu0 0.0
        %1460 = vmatprep.subr.mxu0 0.0
        %1461 = vmatpush1.msra.mxu0 0.0
        %1462 = vmatprep.subr.mxu0 0.0
        %1463 = vmatpush1.msra.mxu0 0.0
        %1464 = vmatprep.subr.mxu0 0.0
        %1465 = vmatpush1.msra.mxu0 0.0
        %1466 = vmatprep.subr.mxu0 0.0
        %1467 = vmatpush1.msra.mxu0 0.0
        %1468 = vmatprep.subr.mxu0 0.0
        %1469 = vmatpush1.msra.mxu0 0.0
        %1470 = vmatprep.subr.mxu0 0.0
        %1471 = vmatpush1.msra.mxu0 0.0
        %1472 = vmatprep.subr.mxu0 0.0
        %1473 = vmatpush1.msra.mxu0 0.0
        %1474 = vmatprep.subr.mxu0 0.0
        %1475 = vmatpush1.msra.mxu0 0.0
        %1476 = vmatprep.subr.mxu0 0.0
        %1477 = vmatpush1.msra.mxu0 0.0
        %1478 = vmatprep.mubr.f32.mxu0 0.0
        %1479 = vmatmul.mubr.f32.gmra.mrb[0].mxu0 %v1409
        %v1480 = vpop.f32.mrb[0].mxu0
        %v1481 = vadd.f32 0.0, %v1480
        %v1482 = vpop.f32.mrb[0].mxu0
        %1483 = vmatprep.mubr.f32.mxu0 0.0
        %1484 = vmatmul.mubr.f32.gmra.mrb[0].mxu0 %v1412
        %v1485 = vpop.f32.mrb[0].mxu0
        %v1486 = vadd.f32 0.0, %v1485
        %v1487 = vpop.f32.mrb[0].mxu0
        %1488 = vdwg.mxu0
        %v1489 = vld [vmem:[%s4] sm:$0xff]
        %v1490 = vld [vmem:[%s4 + $0x8] sm:$0xff]
        %v1491 = vld [vmem:[%s4 + $0x10] sm:$0xff]
        %v1492 = vld [vmem:[%s4 + $0x18] sm:$0xff]
        %v1493 = vld [vmem:[%s5] sm:$0xff]
        %v1494 = vld [vmem:[%s5 + $0x8] sm:$0xff]
        %v1495 = vld [vmem:[%s5 + $0x10] sm:$0xff]
        %v1496 = vld [vmem:[%s5 + $0x18] sm:$0xff]
        %1498 = vset.pattern.permute.xlu0 0
        %1499 = vperm.xlu0 %1498, %v1493
        %v1500 = vpop.permute.xlu0 %1499
        %1503 = vset.pattern.permute.xlu0 0
        %1504 = vperm.xlu0 %1503, %v1494
        %v1505 = vpop.permute.xlu0 %1504
        %1508 = vset.pattern.permute.xlu0 0
        %1509 = vperm.xlu0 %1508, %v1495
        %v1510 = vpop.permute.xlu0 %1509
        %1513 = vset.pattern.permute.xlu0 0
        %1514 = vperm.xlu0 %1513, %v1496
        %v1515 = vpop.permute.xlu0 %1514
        %v1518 = vsel %vm1033, %v1489, 0
        %v1521 = vsel %vm1033, %v1490, 0
        %v1524 = vsel %vm1033, %v1491, 0
        %v1527 = vsel %vm1033, %v1492, 0
        %1529 = vmatprep.subr.mxu0 0.0
        %1530 = vmatpush1.msra.mxu0 %v1400
        %1531 = vmatprep.subr.mxu0 0.0
        %1532 = vmatpush1.msra.mxu0 %v1405
        %1533 = vmatprep.subr.mxu0 0.0
        %1534 = vmatpush1.msra.mxu0 %v1481
        %1535 = vmatprep.subr.mxu0 0.0
        %1536 = vmatpush1.msra.mxu0 %v1486
        %1537 = vmatprep.subr.mxu0 0.0
        %1538 = vmatpush1.msra.mxu0 0.0
        %1539 = vmatprep.subr.mxu0 0.0
        %1540 = vmatpush1.msra.mxu0 0.0
        %1541 = vmatprep.subr.mxu0 0.0
        %1542 = vmatpush1.msra.mxu0 0.0
        %1543 = vmatprep.subr.mxu0 0.0
        %1544 = vmatpush1.msra.mxu0 0.0
        %1545 = vmatprep.subr.mxu0 0.0
        %1546 = vmatpush1.msra.mxu0 0.0
        %1547 = vmatprep.subr.mxu0 0.0
        %1548 = vmatpush1.msra.mxu0 0.0
        %1549 = vmatprep.subr.mxu0 0.0
        %1550 = vmatpush1.msra.mxu0 0.0
        %1551 = vmatprep.subr.mxu0 0.0
        %1552 = vmatpush1.msra.mxu0 0.0
        %1553 = vmatprep.subr.mxu0 0.0
        %1554 = vmatpush1.msra.mxu0 0.0
        %1555 = vmatprep.subr.mxu0 0.0
        %1556 = vmatpush1.msra.mxu0 0.0
        %1557 = vmatprep.subr.mxu0 0.0
        %1558 = vmatpush1.msra.mxu0 0.0
        %1559 = vmatprep.subr.mxu0 0.0
        %1560 = vmatpush1.msra.mxu0 0.0
        %1561 = vmatprep.subr.mxu0 0.0
        %1562 = vmatpush1.msra.mxu0 0.0
        %1563 = vmatprep.subr.mxu0 0.0
        %1564 = vmatpush1.msra.mxu0 0.0
        %1565 = vmatprep.subr.mxu0 0.0
        %1566 = vmatpush1.msra.mxu0 0.0
        %1567 = vmatprep.subr.mxu0 0.0
        %1568 = vmatpush1.msra.mxu0 0.0
        %1569 = vmatprep.subr.mxu0 0.0
        %1570 = vmatpush1.msra.mxu0 0.0
        %1571 = vmatprep.subr.mxu0 0.0
        %1572 = vmatpush1.msra.mxu0 0.0
        %1573 = vmatprep.subr.mxu0 0.0
        %1574 = vmatpush1.msra.mxu0 0.0
        %1575 = vmatprep.subr.mxu0 0.0
        %1576 = vmatpush1.msra.mxu0 0.0
        %1577 = vmatprep.subr.mxu0 0.0
        %1578 = vmatpush1.msra.mxu0 0.0
        %1579 = vmatprep.subr.mxu0 0.0
        %1580 = vmatpush1.msra.mxu0 0.0
        %1581 = vmatprep.subr.mxu0 0.0
        %1582 = vmatpush1.msra.mxu0 0.0
        %1583 = vmatprep.subr.mxu0 0.0
        %1584 = vmatpush1.msra.mxu0 0.0
        %1585 = vmatprep.subr.mxu0 0.0
        %1586 = vmatpush1.msra.mxu0 0.0
        %1587 = vmatprep.subr.mxu0 0.0
        %1588 = vmatpush1.msra.mxu0 0.0
        %1589 = vmatprep.subr.mxu0 0.0
        %1590 = vmatpush1.msra.mxu0 0.0
        %1591 = vmatprep.subr.mxu0 0.0
        %1592 = vmatpush1.msra.mxu0 0.0
        %1593 = vmatprep.mubr.f32.mxu0 0.0
        %1594 = vmatmul.mubr.f32.gmra.mrb[0].mxu0 %v1518
        %v1595 = vpop.f32.mrb[0].mxu0
        %v1596 = vadd.f32 %v1500, %v1595
        %v1597 = vpop.f32.mrb[0].mxu0
        %1598 = vmatprep.mubr.f32.mxu0 0.0
        %1599 = vmatmul.mubr.f32.gmra.mrb[0].mxu0 %v1521
        %v1600 = vpop.f32.mrb[0].mxu0
        %v1601 = vadd.f32 %v1505, %v1600
        %v1602 = vpop.f32.mrb[0].mxu0
        %1603 = vmatprep.mubr.f32.mxu0 0.0
        %1604 = vmatmul.mubr.f32.gmra.mrb[0].mxu0 %v1524
        %v1605 = vpop.f32.mrb[0].mxu0
        %v1606 = vadd.f32 %v1510, %v1605
        %v1607 = vpop.f32.mrb[0].mxu0
        %1608 = vmatprep.mubr.f32.mxu0 0.0
        %1609 = vmatmul.mubr.f32.gmra.mrb[0].mxu0 %v1527
        %v1610 = vpop.f32.mrb[0].mxu0
        %v1611 = vadd.f32 %v1515, %v1610
        %v1612 = vpop.f32.mrb[0].mxu0
        %1613 = vdwg.mxu0
        %v1614 = vmul.f32 %v1025, %v1280
        %v1615 = vmul.f32 %v1026, %v1280
        %v1616 = vmul.f32 %v1027, %v1280
        %v1617 = vmul.f32 %v1028, %v1280
        %v1618 = vadd.f32 %v1596, %v1614
        %v1619 = vadd.f32 %v1601, %v1615
        %v1620 = vadd.f32 %v1606, %v1616
        %v1621 = vadd.f32 %v1611, %v1617
        %1622 = vst.msk [vmem:[%s417] sm:$0xff] %vm1283, %v1618
        %1623 = vst.msk [vmem:[%s417 + $0x8] sm:$0xff] %vm1283, %v1619
        %1624 = vst.msk [vmem:[%s417 + $0x10] sm:$0xff] %vm1283, %v1620
        %1625 = vst.msk [vmem:[%s417 + $0x18] sm:$0xff] %vm1283, %v1621
        %s1626 = sand.u32 %s291, 1
        %s1627 = scalar_lea.sflag [#allocation5], %s1626
        %s1628 = sand.u32 %s291, 1
        %s1629 = smul.addr %s1628, 32
        %s1630 = scalar_lea.vmem [#allocation4], %s1629
        // Predicated region
        $region69: #{tpu_custom_call.1} parent=63 // pred_check
          %p1631 = pneg %p301
        $region70: #{tpu_custom_call.1} parent=63 // pred_check_branch
          %1633 = sbr.rel (%p1631) target = $region72
        $region71: #{tpu_custom_call.1} parent=63 // pred_region
          %s1635 = ssub.s32 512, 512
          %1636 = vsyncadd %s1627, %s1635
          %s1637 = smul.addr %s30, 4
          %s1638 = sadd.s32 %s31, %s1637
          %s1639 = smul.addr %s1638, 128
          %s1640 = scalar_lea.hbm %s11, %s1639
          %s1641 = sshll.u32 %s1630, 4
          %s1642 = int_to_ptr.vmem [resolvable:$true] %s1641
          %1647 = dma.vmem_to_hbm [thread:$0]  %s1642, 512, %s1640, %s1627, 128, 128, 8
        $region72: #{tpu_custom_call.1} parent=63 // pred_fallthru
          _
      $region64: #{tpu_custom_call.1} parent=5 // pred_fallthru
        _
      %p1648 = scmp.le.s32.totalorder 2, %s21
      // Predicated region
      $region73: #{tpu_custom_call.1} parent=5 // pred_check
        %p1649 = pneg %p1648
      $region74: #{tpu_custom_call.1} parent=5 // pred_check_branch
        %1651 = sbr.rel (%p1649) target = $region76
      $region75: #{tpu_custom_call.1} parent=5 // pred_region
        %s1652 = ssub.s32 %s21, 2
        // Predicated region
        $region77: #{tpu_custom_call.1} parent=75 // pred_check
          %p1653 = pneg %p307
        $region78: #{tpu_custom_call.1} parent=75 // pred_check_branch
          %1655 = sbr.rel (%p1653) target = $region80
        $region79: #{tpu_custom_call.1} parent=75 // pred_region
          %s1656 = sand.u32 %s292, 1
          %s1657 = scalar_lea.sflag [#allocation5], %s1656
          %s1658 = sand.u32 %s292, 1
          %s1659 = smul.addr %s1658, 32
          %s1660 = scalar_lea.vmem [#allocation4], %s1659
          %1661 = dma.done %s1657, 512
        $region80: #{tpu_custom_call.1} parent=75 // pred_fallthru
          _
      $region76: #{tpu_custom_call.1} parent=5 // pred_fallthru
        _
    $region6: #{tpu_custom_call.1} parent=1 // loop_footer
      %s25 = sadd.s32 1, %s21
    $region7: #{tpu_custom_call.1} parent=1 // loop_footer_branch
      %20 = sbr.rel target = $region3
    $region8: #{tpu_custom_call.1} parent=1 // loop_exit
      _
    %1662 = vsyncpa [#allocation5], 1
    %s1663 = scalar_lea.sflag [#allocation5], 1
    %1664 = vsyncpa %s1663, 1

</llo_original>
